<compile_context>
chip_gen: v6e
topology: v6e:2x2x1
jax: 0.10.0
libtpu: 0.0.40
codegen_flags: <defaults>
</compile_context>

<pallas_src>
import functools
import math

import jax
import jax.numpy as jnp
from jax.experimental import pallas as pl
from jax.experimental.pallas import tpu as pltpu


# ----------------------------- helpers ---------------------------------------


def _layernorm(x, gamma, beta, eps=1e-5):
    mean = jnp.mean(x, axis=-1, keepdims=True)
    var = jnp.mean((x - mean) ** 2, axis=-1, keepdims=True)
    return (x - mean) * jax.lax.rsqrt(var + eps) * gamma + beta


def _gelu(x):
    # TODO(synk): PyTorch nn.GELU defaults to the exact erf form; the tanh
    # approximation is used here for robust Pallas/Mosaic lowering.
    c = math.sqrt(2.0 / math.pi)
    return 0.5 * x * (1.0 + jnp.tanh(c * (x + 0.044715 * x * x * x)))


# rows of the (L, 9, D) per-layer vector slab
_BQ, _BK, _BV, _BO, _G1, _BE1, _B2, _G2, _BE2 = range(9)


# ----------------------------- kernel -----------------------------------------


def encoder_kernel(
    num_heads,
    # inputs
    x_ref,       # (Bt, S, D) fp32, batch tile
    mask_ref,    # (Bt, 1, S) fp32, 1.0 = padded key position
    wqkv_ref,    # (1, D, 3D) bf16, [Q|K|V] columns, 1/sqrt(hd) folded into Q
    wo_ref,      # (1, D, D)  bf16, (in, out) layout
    w1_ref,      # (1, D, F)  bf16
    w2_ref,      # (1, F, D)  bf16
    vec_ref,     # (1, 9, D)  fp32: rows bq bk bv bo g1 be1 b2 g2 be2
    b1_ref,      # (1, 1, F)  fp32
    # output (doubles as the VMEM-resident residual stream across layers)
    o_ref,       # (Bt, S, D) fp32
):
    layer = pl.program_id(1)
    Bt, S, D = x_ref.shape
    H = num_heads
    hd = D // H

    # Load the input activations into the resident output block at layer 0.
    @pl.when(layer == 0)
    def _():
        o_ref[...] = x_ref[...]

    x = o_ref[...].reshape(Bt * S, D)                 # fp32 residual stream
    x_bf = x.astype(jnp.bfloat16)

    vec = vec_ref[0]                                  # (9, D) fp32
    bqkv = jnp.concatenate(
        [vec[_BQ:_BQ + 1], vec[_BK:_BK + 1], vec[_BV:_BV + 1]], axis=-1
    )                                                 # (1, 3D)

    # --- single fused QKV projection (scale pre-folded into Q) ---------------
    qkv = jnp.dot(x_bf, wqkv_ref[0],
                  preferred_element_type=jnp.float32) + bqkv      # (Bt*S, 3D)

    # --- attention (per batch element; Bt is static and small) ---------------
    mask = mask_ref[...]                              # (Bt, 1, S)
    ctx_rows = []
    for b in range(Bt):
        qkv_b = qkv[b * S:(b + 1) * S, :]             # (S, 3D) sublane slice

        def heads(off, _q=qkv_b):
            # TODO(synk): with hd padded to a multiple of 128 this split
            # becomes a free lane-aligned retile instead of an XLU permute.
            return jnp.stack(
                [_q[:, off + h * hd: off + (h + 1) * hd] for h in range(H)],
                axis=0).astype(jnp.bfloat16)          # (H, S, hd)

        q3 = heads(0)
        k3 = heads(D)
        v3 = heads(2 * D)

        s = jnp.einsum("hqd,hkd->hqk", q3, k3,
                       preferred_element_type=jnp.float32)        # (H, S, S)
        s = s + mask[b] * (-1e9)                      # implicit (1,1,S) bcast
        s = s - jnp.max(s, axis=-1, keepdims=True)
        p = jnp.exp(s)
        p_bf = (p * pl.reciprocal(jnp.sum(p, axis=-1, keepdims=True),
                                  approx=True)).astype(jnp.bfloat16)
        ctx = jnp.einsum("hqk,hkd->hqd", p_bf, v3,
                         preferred_element_type=jnp.float32)      # (H, S, hd)
        # merge heads back onto the lane dim -> (S, D)
        ctx_rows.append(jnp.concatenate([ctx[h] for h in range(H)], axis=-1))

    ctx_all = jnp.concatenate(ctx_rows, axis=0).astype(jnp.bfloat16)  # (Bt*S, D)

    # --- output projection: one K=D MXU contraction ---------------------------
    attn = jnp.dot(ctx_all, wo_ref[0],
                   preferred_element_type=jnp.float32) + vec[_BO:_BO + 1]

    # --- residual + LayerNorm 1 ------------------------------------------------
    h1 = _layernorm(x + attn, vec[_G1:_G1 + 1], vec[_BE1:_BE1 + 1])

    # --- feed-forward ------------------------------------------------------------
    # TODO(synk): tile F (and add a query-tile axis) for production shapes so
    # the (Bt*S, F) intermediate is not fully VMEM-resident (v7x: 64 MiB).
    ff = jnp.dot(h1.astype(jnp.bfloat16), w1_ref[0],
                 preferred_element_type=jnp.float32) + b1_ref[0]
    ff_bf = _gelu(ff).astype(jnp.bfloat16)
    ff2 = jnp.dot(ff_bf, w2_ref[0],
                  preferred_element_type=jnp.float32) + vec[_B2:_B2 + 1]

    # --- residual + LayerNorm 2 ---------------------------------------------------
    h2 = _layernorm(h1 + ff2, vec[_G2:_G2 + 1], vec[_BE2:_BE2 + 1])

    o_ref[...] = h2.reshape(Bt, S, D)


# ----------------------------- wrapper ----------------------------------------


def pack_params(params, num_heads):
    """Stack per-layer PyTorch-layout params into fused kernel layouts."""
    D = params[0]["wq"].shape[0]
    hd = D // num_heads
    scale = 1.0 / math.sqrt(hd)

    def stk(name):
        return jnp.stack([p[name] for p in params], axis=0)       # (L, ...)

    wq_t = jnp.transpose(stk("wq"), (0, 2, 1)) * scale            # scale folded
    wk_t = jnp.transpose(stk("wk"), (0, 2, 1))
    wv_t = jnp.transpose(stk("wv"), (0, 2, 1))
    wqkv_t = jnp.concatenate([wq_t, wk_t, wv_t], axis=-1).astype(jnp.bfloat16)

    vecD = jnp.stack(
        [stk("bq")[:, 0] * scale, stk("bk")[:, 0], stk("bv")[:, 0],
         stk("bo")[:, 0], stk("g1")[:, 0], stk("be1")[:, 0],
         stk("b2")[:, 0], stk("g2")[:, 0], stk("be2")[:, 0]],
        axis=1)                                                    # (L, 9, D)

    return {
        "wqkv_t": wqkv_t,                                          # (L, D, 3D)
        "wo_t": jnp.transpose(stk("wo"), (0, 2, 1)).astype(jnp.bfloat16),  # (L,D,D)
        "w1_t": jnp.transpose(stk("w1"), (0, 2, 1)).astype(jnp.bfloat16),  # (L,D,F)
        "w2_t": jnp.transpose(stk("w2"), (0, 2, 1)).astype(jnp.bfloat16),  # (L,F,D)
        "b1": stk("b1"),                                           # (L, 1, F)
        "vecD": vecD,                                              # (L, 9, D)
    }


def encoder_forward(hidden_states, padding_mask, packed, num_heads,
                    batch_tile=None):
    """Encoder.forward: all `depth` blocks fused into ONE pallas_call."""
    B, S, D = hidden_states.shape
    L = packed["wqkv_t"].shape[0]
    F = packed["w1_t"].shape[2]

    if batch_tile is None:
        # largest divisor of B that is <= 8: each layer's weights are reused
        # for Bt batch rows per grid step (weight DMA traffic / Bt) while
        # keeping the activation VMEM footprint bounded.
        batch_tile = next(d for d in range(min(B, 8), 0, -1) if B % d == 0)
    Bt = batch_tile
    assert B % Bt == 0
    nb = B // Bt

    mask_f = padding_mask.astype(jnp.float32)[:, None, :]          # (B, 1, S)

    def wspec(shape):
        return pl.BlockSpec(shape,
                            lambda b, l, _n=len(shape): (l,) + (0,) * (_n - 1))

    return pl.pallas_call(
        functools.partial(encoder_kernel, num_heads),
        out_shape=jax.ShapeDtypeStruct((B, S, D), jnp.float32),
        grid=(nb, L),
        in_specs=[
            pl.BlockSpec((Bt, S, D), lambda b, l: (b, 0, 0)),      # x
            pl.BlockSpec((Bt, 1, S), lambda b, l: (b, 0, 0)),      # mask
            wspec((1, D, 3 * D)),                                   # wqkv_t
            wspec((1, D, D)),                                       # wo_t
            wspec((1, D, F)),                                       # w1_t
            wspec((1, F, D)),                                       # w2_t
            wspec((1, 9, D)),                                       # vecD
            wspec((1, 1, F)),                                       # b1
        ],
        out_specs=pl.BlockSpec((Bt, S, D), lambda b, l: (b, 0, 0)),
        compiler_params=pltpu.CompilerParams(
            dimension_semantics=("parallel", "arbitrary"),
            # 48 MiB: headroom on v7x (64 MiB physical VMEM) while still above
            # the default scoped limit on v5e / v6e.
            vmem_limit_bytes=48 * 1024 * 1024,
        ),
    )(
        hidden_states, mask_f,
        packed["wqkv_t"], packed["wo_t"], packed["w1_t"], packed["w2_t"],
        packed["vecD"], packed["b1"],
    )


# ----------------------- reference (plain JAX, fp32) ----------------------------


def encoder_reference(hidden_states, padding_mask, params, num_heads):
    mask_bias = padding_mask.astype(jnp.float32)[:, None, None, :] * (-1e9)
    h = hidden_states
    for p in params:
        B, S, D = h.shape
        hd = D // num_heads
        q = h @ p["wq"].T + p["bq"]
        k = h @ p["wk"].T + p["bk"]
        v = h @ p["wv"].T + p["bv"]
        q = q.reshape(B, S, num_heads, hd).transpose(0, 2, 1, 3)
        k = k.reshape(B, S, num_heads, hd).transpose(0, 2, 1, 3)
        v = v.reshape(B, S, num_heads, hd).transpose(0, 2, 1, 3)
        s = jnp.einsum("bhqd,bhkd->bhqk", q, k) / math.sqrt(hd) + mask_bias
        pgt = jax.nn.softmax(s, axis=-1)
        ctx = jnp.einsum("bhqk,bhkd->bhqd", pgt, v).transpose(0, 2, 1, 3).reshape(B, S, D)
        attn = ctx @ p["wo"].T + p["bo"]
        x1 = h + attn
        mu = x1.mean(-1, keepdims=True)
        var = ((x1 - mu) ** 2).mean(-1, keepdims=True)
        x1 = (x1 - mu) / jnp.sqrt(var + 1e-5) * p["g1"] + p["be1"]
        ff = x1 @ p["w1"].T + p["b1"]
        c = math.sqrt(2.0 / math.pi)
        ff = 0.5 * ff * (1.0 + jnp.tanh(c * (ff + 0.044715 * ff ** 3)))
        ff = ff @ p["w2"].T + p["b2"]
        x2 = x1 + ff
        mu = x2.mean(-1, keepdims=True)
        var = ((x2 - mu) ** 2).mean(-1, keepdims=True)
        h = (x2 - mu) / jnp.sqrt(var + 1e-5) * p["g2"] + p["be2"]
    return h


# ----------------------------- param init ---------------------------------------


def init_params(key, depth, embed_dim, ffn_dim):
    params = []
    for _ in range(depth):
        keys = jax.random.split(key, 9)
        key = keys[0]
        sd = 0.02
        p = {
            "wq": sd * jax.random.normal(keys[1], (embed_dim, embed_dim), jnp.float32),
            "wk": sd * jax.random.normal(keys[2], (embed_dim, embed_dim), jnp.float32),
            "wv": sd * jax.random.normal(keys[3], (embed_dim, embed_dim), jnp.float32),
            "bq": jnp.zeros((1, embed_dim), jnp.float32),
            "bk": jnp.zeros((1, embed_dim), jnp.float32),
            "bv": jnp.zeros((1, embed_dim), jnp.float32),
            "wo": sd * jax.random.normal(keys[4], (embed_dim, embed_dim), jnp.float32),
            "bo": jnp.zeros((1, embed_dim), jnp.float32),
            "g1": jnp.ones((1, embed_dim), jnp.float32),
            "be1": jnp.zeros((1, embed_dim), jnp.float32),
            "w1": sd * jax.random.normal(keys[5], (ffn_dim, embed_dim), jnp.float32),
            "b1": jnp.zeros((1, ffn_dim), jnp.float32),
            "w2": sd * jax.random.normal(keys[6], (embed_dim, ffn_dim), jnp.float32),
            "b2": jnp.zeros((1, embed_dim), jnp.float32),
            "g2": jnp.ones((1, embed_dim), jnp.float32),
            "be2": jnp.zeros((1, embed_dim), jnp.float32),
        }
        params.append(p)
    return params


# ----------------------------- main ----------------------------------------------


if __name__ == "__main__":
    B, S, D = 2, 8, 32
    num_heads = 4
    depth = 2
    ffn_dim = 4 * D

    key = jax.random.PRNGKey(0)
    k_x, k_p = jax.random.split(key)

    hidden_states = jax.random.normal(k_x, (B, S, D), jnp.float32)
    # key_padding_mask: True = padded position (PyTorch convention)
    padding_mask = jnp.zeros((B, S), jnp.bool_).at[1, S - 2:].set(True)

    params = init_params(k_p, depth, D, ffn_dim)
    packed = pack_params(params, num_heads)

    out = encoder_forward(hidden_states, padding_mask, packed, num_heads)
    out = jax.block_until_ready(out)

    ref = encoder_reference(hidden_states, padding_mask, params, num_heads)
    assert out.shape == (B, S, D)
    # bf16 MXU operands + approx-reciprocal softmax vs fp32 reference.
    assert jnp.max(jnp.abs(out - ref)) < 2e-2

    print("KERNEL_OK")
</pallas_src>

<mosaic_0001>
module attributes {stable_mosaic.version = 11 : i64} {
  func.func @encoder_kernel(%arg0: i32, %arg1: i32, %arg2: memref<2x8x32xf32, #tpu.memory_space<vmem>>, %arg3: memref<2x1x8xf32, #tpu.memory_space<vmem>>, %arg4: memref<1x32x96xbf16, #tpu.memory_space<vmem>>, %arg5: memref<1x32x32xbf16, #tpu.memory_space<vmem>>, %arg6: memref<1x32x128xbf16, #tpu.memory_space<vmem>>, %arg7: memref<1x128x32xbf16, #tpu.memory_space<vmem>>, %arg8: memref<1x9x32xf32, #tpu.memory_space<vmem>>, %arg9: memref<1x1x128xf32, #tpu.memory_space<vmem>>, %arg10: memref<2x8x32xf32, #tpu.memory_space<vmem>>) attributes {dimension_semantics = [#tpu.dimension_semantics<parallel>, #tpu.dimension_semantics<arbitrary>], iteration_bounds = array<i64: 1, 2>, scalar_prefetch = 0 : i64, scratch_operands = 0 : i64, tpu.core_type = #tpu.core_type<tc>, window_params = [{transform_indices = @transform_0, window_bounds = array<i64: 2, 8, 32>}, {transform_indices = @transform_1, window_bounds = array<i64: 2, 1, 8>}, {transform_indices = @transform_2, window_bounds = array<i64: 1, 32, 96>}, {transform_indices = @transform_3, window_bounds = array<i64: 1, 32, 32>}, {transform_indices = @transform_4, window_bounds = array<i64: 1, 32, 128>}, {transform_indices = @transform_5, window_bounds = array<i64: 1, 128, 32>}, {transform_indices = @transform_6, window_bounds = array<i64: 1, 9, 32>}, {transform_indices = @transform_7, window_bounds = array<i64: 1, 1, 128>}, {transform_indices = @transform_8, window_bounds = array<i64: 2, 8, 32>}]} {
    %c0_i32 = arith.constant 0 : i32
    %0 = arith.cmpi eq, %arg1, %c0_i32 : i32
    %1 = arith.extui %0 : i1 to i32
    %c0_i32_0 = arith.constant 0 : i32
    %2 = arith.cmpi ne, %1, %c0_i32_0 : i32
    scf.if %2 {
      %c0_54 = arith.constant 0 : index
      %c0_55 = arith.constant 0 : index
      %c0_56 = arith.constant 0 : index
      %226 = vector.load %arg2[%c0_54, %c0_55, %c0_56] : memref<2x8x32xf32, #tpu.memory_space<vmem>>, vector<2x8x32xf32>
      %c0_57 = arith.constant 0 : index
      %c0_58 = arith.constant 0 : index
      %c0_59 = arith.constant 0 : index
      %227 = vector.load %arg10[%c0_57, %c0_58, %c0_59] : memref<2x8x32xf32, #tpu.memory_space<vmem>>, vector<2x8x32xf32>
      tpu.vector_store %arg10[%c0_57, %c0_58, %c0_59], %226 {strides = array<i32>} : memref<2x8x32xf32, #tpu.memory_space<vmem>>, vector<2x8x32xf32>,
    } else {
    }
    %c0 = arith.constant 0 : index
    %c0_1 = arith.constant 0 : index
    %c0_2 = arith.constant 0 : index
    %3 = vector.load %arg10[%c0, %c0_1, %c0_2] : memref<2x8x32xf32, #tpu.memory_space<vmem>>, vector<2x8x32xf32>
    %4 = vector.shape_cast %3 : vector<2x8x32xf32> to vector<16x32xf32>
    %5 = arith.truncf %4 : vector<16x32xf32> to vector<16x32xbf16>
    %c0_3 = arith.constant 0 : index
    %c0_4 = arith.constant 0 : index
    %c0_5 = arith.constant 0 : index
    %6 = vector.load %arg8[%c0_3, %c0_4, %c0_5] : memref<1x9x32xf32, #tpu.memory_space<vmem>>, vector<1x9x32xf32>
    %7 = vector.shape_cast %6 : vector<1x9x32xf32> to vector<9x32xf32>
    %8 = vector.extract_strided_slice %7 {offsets = [0, 0], sizes = [1, 32], strides = [1, 1]} : vector<9x32xf32> to vector<1x32xf32>
    %9 = vector.extract_strided_slice %7 {offsets = [1, 0], sizes = [1, 32], strides = [1, 1]} : vector<9x32xf32> to vector<1x32xf32>
    %10 = vector.extract_strided_slice %7 {offsets = [2, 0], sizes = [1, 32], strides = [1, 1]} : vector<9x32xf32> to vector<1x32xf32>
    %11 = tpu.concatenate %8, %9, %10 in 1 : vector<1x32xf32>, vector<1x32xf32>, vector<1x32xf32> -> vector<1x96xf32>
    %c0_6 = arith.constant 0 : index
    %c0_7 = arith.constant 0 : index
    %c0_8 = arith.constant 0 : index
    %12 = vector.load %arg4[%c0_6, %c0_7, %c0_8] : memref<1x32x96xbf16, #tpu.memory_space<vmem>>, vector<1x32x96xbf16>
    %13 = vector.shape_cast %12 : vector<1x32x96xbf16> to vector<32x96xbf16>
    %cst = arith.constant dense<0.000000e+00> : vector<16x96xf32>
    %14 = tpu.matmul %5, %13, %cst {dimension_numbers = #tpu.dot_dimension_numbers<[1], [0], [0], [1], [0, 0, 1, 1], [], []>} : vector<16x32xbf16>, vector<32x96xbf16>, vector<16x96xf32> -> vector<16x96xf32>
    %15 = vector.broadcast %11 : vector<1x96xf32> to vector<16x96xf32>
    %16 = arith.addf %14, %15 : vector<16x96xf32>
    %c0_9 = arith.constant 0 : index
    %c0_10 = arith.constant 0 : index
    %c0_11 = arith.constant 0 : index
    %17 = vector.load %arg3[%c0_9, %c0_10, %c0_11] : memref<2x1x8xf32, #tpu.memory_space<vmem>>, vector<2x1x8xf32>
    %18 = vector.extract_strided_slice %16 {offsets = [0, 0], sizes = [8, 96], strides = [1, 1]} : vector<16x96xf32> to vector<8x96xf32>
    %19 = vector.extract_strided_slice %18 {offsets = [0, 0], sizes = [8, 8], strides = [1, 1]} : vector<8x96xf32> to vector<8x8xf32>
    %20 = vector.extract_strided_slice %18 {offsets = [0, 8], sizes = [8, 8], strides = [1, 1]} : vector<8x96xf32> to vector<8x8xf32>
    %21 = vector.extract_strided_slice %18 {offsets = [0, 16], sizes = [8, 8], strides = [1, 1]} : vector<8x96xf32> to vector<8x8xf32>
    %22 = vector.extract_strided_slice %18 {offsets = [0, 24], sizes = [8, 8], strides = [1, 1]} : vector<8x96xf32> to vector<8x8xf32>
    %23 = vector.shape_cast %19 : vector<8x8xf32> to vector<1x8x8xf32>
    %24 = vector.shape_cast %20 : vector<8x8xf32> to vector<1x8x8xf32>
    %25 = vector.shape_cast %21 : vector<8x8xf32> to vector<1x8x8xf32>
    %26 = vector.shape_cast %22 : vector<8x8xf32> to vector<1x8x8xf32>
    %27 = tpu.concatenate %23, %24, %25, %26 in 0 : vector<1x8x8xf32>, vector<1x8x8xf32>, vector<1x8x8xf32>, vector<1x8x8xf32> -> vector<4x8x8xf32>
    %28 = arith.truncf %27 : vector<4x8x8xf32> to vector<4x8x8xbf16>
    %29 = vector.extract_strided_slice %18 {offsets = [0, 32], sizes = [8, 8], strides = [1, 1]} : vector<8x96xf32> to vector<8x8xf32>
    %30 = vector.extract_strided_slice %18 {offsets = [0, 40], sizes = [8, 8], strides = [1, 1]} : vector<8x96xf32> to vector<8x8xf32>
    %31 = vector.extract_strided_slice %18 {offsets = [0, 48], sizes = [8, 8], strides = [1, 1]} : vector<8x96xf32> to vector<8x8xf32>
    %32 = vector.extract_strided_slice %18 {offsets = [0, 56], sizes = [8, 8], strides = [1, 1]} : vector<8x96xf32> to vector<8x8xf32>
    %33 = vector.shape_cast %29 : vector<8x8xf32> to vector<1x8x8xf32>
    %34 = vector.shape_cast %30 : vector<8x8xf32> to vector<1x8x8xf32>
    %35 = vector.shape_cast %31 : vector<8x8xf32> to vector<1x8x8xf32>
    %36 = vector.shape_cast %32 : vector<8x8xf32> to vector<1x8x8xf32>
    %37 = tpu.concatenate %33, %34, %35, %36 in 0 : vector<1x8x8xf32>, vector<1x8x8xf32>, vector<1x8x8xf32>, vector<1x8x8xf32> -> vector<4x8x8xf32>
    %38 = arith.truncf %37 : vector<4x8x8xf32> to vector<4x8x8xbf16>
    %39 = vector.extract_strided_slice %18 {offsets = [0, 64], sizes = [8, 8], strides = [1, 1]} : vector<8x96xf32> to vector<8x8xf32>
    %40 = vector.extract_strided_slice %18 {offsets = [0, 72], sizes = [8, 8], strides = [1, 1]} : vector<8x96xf32> to vector<8x8xf32>
    %41 = vector.extract_strided_slice %18 {offsets = [0, 80], sizes = [8, 8], strides = [1, 1]} : vector<8x96xf32> to vector<8x8xf32>
    %42 = vector.extract_strided_slice %18 {offsets = [0, 88], sizes = [8, 8], strides = [1, 1]} : vector<8x96xf32> to vector<8x8xf32>
    %43 = vector.shape_cast %39 : vector<8x8xf32> to vector<1x8x8xf32>
    %44 = vector.shape_cast %40 : vector<8x8xf32> to vector<1x8x8xf32>
    %45 = vector.shape_cast %41 : vector<8x8xf32> to vector<1x8x8xf32>
    %46 = vector.shape_cast %42 : vector<8x8xf32> to vector<1x8x8xf32>
    %47 = tpu.concatenate %43, %44, %45, %46 in 0 : vector<1x8x8xf32>, vector<1x8x8xf32>, vector<1x8x8xf32>, vector<1x8x8xf32> -> vector<4x8x8xf32>
    %48 = arith.truncf %47 : vector<4x8x8xf32> to vector<4x8x8xbf16>
    "tpu.trace_start"() <{level = 10 : i32, message = "hqd,hkd->hqk"}> : () -> ()
    %cst_12 = arith.constant dense<0.000000e+00> : vector<4x8x8xf32>
    %49 = tpu.matmul %28, %38, %cst_12 {dimension_numbers = #tpu.dot_dimension_numbers<[2], [2], [1], [1], [0, 0, 0, 1, 1, 1], [0], [0]>} : vector<4x8x8xbf16>, vector<4x8x8xbf16>, vector<4x8x8xf32> -> vector<4x8x8xf32>
    "tpu.trace_stop"() : () -> ()
    %50 = vector.extract_strided_slice %17 {offsets = [0, 0, 0], sizes = [1, 1, 8], strides = [1, 1, 1]} : vector<2x1x8xf32> to vector<1x1x8xf32>
    %51 = vector.shape_cast %50 : vector<1x1x8xf32> to vector<1x8xf32>
    %cst_13 = arith.constant -1.000000e+09 : f32
    %52 = vector.broadcast %cst_13 : f32 to vector<1x8xf32>
    %53 = arith.mulf %51, %52 : vector<1x8xf32>
    %54 = vector.shape_cast %53 : vector<1x8xf32> to vector<1x1x8xf32>
    %55 = vector.broadcast %54 : vector<1x1x8xf32> to vector<4x8x8xf32>
    %56 = arith.addf %49, %55 : vector<4x8x8xf32>
    %cst_14 = arith.constant dense<0xFF800000> : vector<4x8xf32>
    %57 = vector.multi_reduction <maximumf>, %56, %cst_14 [2] : vector<4x8x8xf32> to vector<4x8xf32>
    %58 = vector.shape_cast %57 : vector<4x8xf32> to vector<4x8x1xf32>
    %59 = vector.broadcast %58 : vector<4x8x1xf32> to vector<4x8x8xf32>
    %60 = arith.subf %56, %59 : vector<4x8x8xf32>
    %61 = math.exp %60 : vector<4x8x8xf32>
    %cst_15 = arith.constant dense<0.000000e+00> : vector<4x8xf32>
    %62 = vector.multi_reduction <add>, %61, %cst_15 [2] : vector<4x8x8xf32> to vector<4x8xf32>
    %63 = vector.shape_cast %62 : vector<4x8xf32> to vector<4x8x1xf32>
    %64 = tpu.reciprocal %63 {approx = true} : vector<4x8x1xf32> -> vector<4x8x1xf32>
    %65 = vector.broadcast %64 : vector<4x8x1xf32> to vector<4x8x8xf32>
    %66 = arith.mulf %61, %65 : vector<4x8x8xf32>
    %67 = arith.truncf %66 : vector<4x8x8xf32> to vector<4x8x8xbf16>
    "tpu.trace_start"() <{level = 10 : i32, message = "hqk,hkd->hqd"}> : () -> ()
    %cst_16 = arith.constant dense<0.000000e+00> : vector<4x8x8xf32>
    %68 = tpu.matmul %67, %48, %cst_16 {dimension_numbers = #tpu.dot_dimension_numbers<[2], [1], [1], [2], [0, 0, 0, 1, 1, 2], [0], [0]>} : vector<4x8x8xbf16>, vector<4x8x8xbf16>, vector<4x8x8xf32> -> vector<4x8x8xf32>
    "tpu.trace_stop"() : () -> ()
    %69 = vector.extract_strided_slice %68 {offsets = [0, 0, 0], sizes = [1, 8, 8], strides = [1, 1, 1]} : vector<4x8x8xf32> to vector<1x8x8xf32>
    %70 = vector.shape_cast %69 : vector<1x8x8xf32> to vector<8x8xf32>
    %71 = vector.extract_strided_slice %68 {offsets = [1, 0, 0], sizes = [1, 8, 8], strides = [1, 1, 1]} : vector<4x8x8xf32> to vector<1x8x8xf32>
    %72 = vector.shape_cast %71 : vector<1x8x8xf32> to vector<8x8xf32>
    %73 = vector.extract_strided_slice %68 {offsets = [2, 0, 0], sizes = [1, 8, 8], strides = [1, 1, 1]} : vector<4x8x8xf32> to vector<1x8x8xf32>
    %74 = vector.shape_cast %73 : vector<1x8x8xf32> to vector<8x8xf32>
    %75 = vector.extract_strided_slice %68 {offsets = [3, 0, 0], sizes = [1, 8, 8], strides = [1, 1, 1]} : vector<4x8x8xf32> to vector<1x8x8xf32>
    %76 = vector.shape_cast %75 : vector<1x8x8xf32> to vector<8x8xf32>
    %77 = tpu.concatenate %70, %72, %74, %76 in 1 : vector<8x8xf32>, vector<8x8xf32>, vector<8x8xf32>, vector<8x8xf32> -> vector<8x32xf32>
    %78 = vector.extract_strided_slice %16 {offsets = [8, 0], sizes = [8, 96], strides = [1, 1]} : vector<16x96xf32> to vector<8x96xf32>
    %79 = vector.extract_strided_slice %78 {offsets = [0, 0], sizes = [8, 8], strides = [1, 1]} : vector<8x96xf32> to vector<8x8xf32>
    %80 = vector.extract_strided_slice %78 {offsets = [0, 8], sizes = [8, 8], strides = [1, 1]} : vector<8x96xf32> to vector<8x8xf32>
    %81 = vector.extract_strided_slice %78 {offsets = [0, 16], sizes = [8, 8], strides = [1, 1]} : vector<8x96xf32> to vector<8x8xf32>
    %82 = vector.extract_strided_slice %78 {offsets = [0, 24], sizes = [8, 8], strides = [1, 1]} : vector<8x96xf32> to vector<8x8xf32>
    %83 = vector.shape_cast %79 : vector<8x8xf32> to vector<1x8x8xf32>
    %84 = vector.shape_cast %80 : vector<8x8xf32> to vector<1x8x8xf32>
    %85 = vector.shape_cast %81 : vector<8x8xf32> to vector<1x8x8xf32>
    %86 = vector.shape_cast %82 : vector<8x8xf32> to vector<1x8x8xf32>
    %87 = tpu.concatenate %83, %84, %85, %86 in 0 : vector<1x8x8xf32>, vector<1x8x8xf32>, vector<1x8x8xf32>, vector<1x8x8xf32> -> vector<4x8x8xf32>
    %88 = arith.truncf %87 : vector<4x8x8xf32> to vector<4x8x8xbf16>
    %89 = vector.extract_strided_slice %78 {offsets = [0, 32], sizes = [8, 8], strides = [1, 1]} : vector<8x96xf32> to vector<8x8xf32>
    %90 = vector.extract_strided_slice %78 {offsets = [0, 40], sizes = [8, 8], strides = [1, 1]} : vector<8x96xf32> to vector<8x8xf32>
    %91 = vector.extract_strided_slice %78 {offsets = [0, 48], sizes = [8, 8], strides = [1, 1]} : vector<8x96xf32> to vector<8x8xf32>
    %92 = vector.extract_strided_slice %78 {offsets = [0, 56], sizes = [8, 8], strides = [1, 1]} : vector<8x96xf32> to vector<8x8xf32>
    %93 = vector.shape_cast %89 : vector<8x8xf32> to vector<1x8x8xf32>
    %94 = vector.shape_cast %90 : vector<8x8xf32> to vector<1x8x8xf32>
    %95 = vector.shape_cast %91 : vector<8x8xf32> to vector<1x8x8xf32>
    %96 = vector.shape_cast %92 : vector<8x8xf32> to vector<1x8x8xf32>
    %97 = tpu.concatenate %93, %94, %95, %96 in 0 : vector<1x8x8xf32>, vector<1x8x8xf32>, vector<1x8x8xf32>, vector<1x8x8xf32> -> vector<4x8x8xf32>
    %98 = arith.truncf %97 : vector<4x8x8xf32> to vector<4x8x8xbf16>
    %99 = vector.extract_strided_slice %78 {offsets = [0, 64], sizes = [8, 8], strides = [1, 1]} : vector<8x96xf32> to vector<8x8xf32>
    %100 = vector.extract_strided_slice %78 {offsets = [0, 72], sizes = [8, 8], strides = [1, 1]} : vector<8x96xf32> to vector<8x8xf32>
    %101 = vector.extract_strided_slice %78 {offsets = [0, 80], sizes = [8, 8], strides = [1, 1]} : vector<8x96xf32> to vector<8x8xf32>
    %102 = vector.extract_strided_slice %78 {offsets = [0, 88], sizes = [8, 8], strides = [1, 1]} : vector<8x96xf32> to vector<8x8xf32>
    %103 = vector.shape_cast %99 : vector<8x8xf32> to vector<1x8x8xf32>
    %104 = vector.shape_cast %100 : vector<8x8xf32> to vector<1x8x8xf32>
    %105 = vector.shape_cast %101 : vector<8x8xf32> to vector<1x8x8xf32>
    %106 = vector.shape_cast %102 : vector<8x8xf32> to vector<1x8x8xf32>
    %107 = tpu.concatenate %103, %104, %105, %106 in 0 : vector<1x8x8xf32>, vector<1x8x8xf32>, vector<1x8x8xf32>, vector<1x8x8xf32> -> vector<4x8x8xf32>
    %108 = arith.truncf %107 : vector<4x8x8xf32> to vector<4x8x8xbf16>
    "tpu.trace_start"() <{level = 10 : i32, message = "hqd,hkd->hqk"}> : () -> ()
    %cst_17 = arith.constant dense<0.000000e+00> : vector<4x8x8xf32>
    %109 = tpu.matmul %88, %98, %cst_17 {dimension_numbers = #tpu.dot_dimension_numbers<[2], [2], [1], [1], [0, 0, 0, 1, 1, 1], [0], [0]>} : vector<4x8x8xbf16>, vector<4x8x8xbf16>, vector<4x8x8xf32> -> vector<4x8x8xf32>
    "tpu.trace_stop"() : () -> ()
    %110 = vector.extract_strided_slice %17 {offsets = [1, 0, 0], sizes = [1, 1, 8], strides = [1, 1, 1]} : vector<2x1x8xf32> to vector<1x1x8xf32>
    %111 = vector.shape_cast %110 : vector<1x1x8xf32> to vector<1x8xf32>
    %cst_18 = arith.constant -1.000000e+09 : f32
    %112 = vector.broadcast %cst_18 : f32 to vector<1x8xf32>
    %113 = arith.mulf %111, %112 : vector<1x8xf32>
    %114 = vector.shape_cast %113 : vector<1x8xf32> to vector<1x1x8xf32>
    %115 = vector.broadcast %114 : vector<1x1x8xf32> to vector<4x8x8xf32>
    %116 = arith.addf %109, %115 : vector<4x8x8xf32>
    %cst_19 = arith.constant dense<0xFF800000> : vector<4x8xf32>
    %117 = vector.multi_reduction <maximumf>, %116, %cst_19 [2] : vector<4x8x8xf32> to vector<4x8xf32>
    %118 = vector.shape_cast %117 : vector<4x8xf32> to vector<4x8x1xf32>
    %119 = vector.broadcast %118 : vector<4x8x1xf32> to vector<4x8x8xf32>
    %120 = arith.subf %116, %119 : vector<4x8x8xf32>
    %121 = math.exp %120 : vector<4x8x8xf32>
    %cst_20 = arith.constant dense<0.000000e+00> : vector<4x8xf32>
    %122 = vector.multi_reduction <add>, %121, %cst_20 [2] : vector<4x8x8xf32> to vector<4x8xf32>
    %123 = vector.shape_cast %122 : vector<4x8xf32> to vector<4x8x1xf32>
    %124 = tpu.reciprocal %123 {approx = true} : vector<4x8x1xf32> -> vector<4x8x1xf32>
    %125 = vector.broadcast %124 : vector<4x8x1xf32> to vector<4x8x8xf32>
    %126 = arith.mulf %121, %125 : vector<4x8x8xf32>
    %127 = arith.truncf %126 : vector<4x8x8xf32> to vector<4x8x8xbf16>
    "tpu.trace_start"() <{level = 10 : i32, message = "hqk,hkd->hqd"}> : () -> ()
    %cst_21 = arith.constant dense<0.000000e+00> : vector<4x8x8xf32>
    %128 = tpu.matmul %127, %108, %cst_21 {dimension_numbers = #tpu.dot_dimension_numbers<[2], [1], [1], [2], [0, 0, 0, 1, 1, 2], [0], [0]>} : vector<4x8x8xbf16>, vector<4x8x8xbf16>, vector<4x8x8xf32> -> vector<4x8x8xf32>
    "tpu.trace_stop"() : () -> ()
    %129 = vector.extract_strided_slice %128 {offsets = [0, 0, 0], sizes = [1, 8, 8], strides = [1, 1, 1]} : vector<4x8x8xf32> to vector<1x8x8xf32>
    %130 = vector.shape_cast %129 : vector<1x8x8xf32> to vector<8x8xf32>
    %131 = vector.extract_strided_slice %128 {offsets = [1, 0, 0], sizes = [1, 8, 8], strides = [1, 1, 1]} : vector<4x8x8xf32> to vector<1x8x8xf32>
    %132 = vector.shape_cast %131 : vector<1x8x8xf32> to vector<8x8xf32>
    %133 = vector.extract_strided_slice %128 {offsets = [2, 0, 0], sizes = [1, 8, 8], strides = [1, 1, 1]} : vector<4x8x8xf32> to vector<1x8x8xf32>
    %134 = vector.shape_cast %133 : vector<1x8x8xf32> to vector<8x8xf32>
    %135 = vector.extract_strided_slice %128 {offsets = [3, 0, 0], sizes = [1, 8, 8], strides = [1, 1, 1]} : vector<4x8x8xf32> to vector<1x8x8xf32>
    %136 = vector.shape_cast %135 : vector<1x8x8xf32> to vector<8x8xf32>
    %137 = tpu.concatenate %130, %132, %134, %136 in 1 : vector<8x8xf32>, vector<8x8xf32>, vector<8x8xf32>, vector<8x8xf32> -> vector<8x32xf32>
    %138 = tpu.concatenate %77, %137 in 0 : vector<8x32xf32>, vector<8x32xf32> -> vector<16x32xf32>
    %139 = arith.truncf %138 : vector<16x32xf32> to vector<16x32xbf16>
    %c0_22 = arith.constant 0 : index
    %c0_23 = arith.constant 0 : index
    %c0_24 = arith.constant 0 : index
    %140 = vector.load %arg5[%c0_22, %c0_23, %c0_24] : memref<1x32x32xbf16, #tpu.memory_space<vmem>>, vector<1x32x32xbf16>
    %141 = vector.shape_cast %140 : vector<1x32x32xbf16> to vector<32x32xbf16>
    %cst_25 = arith.constant dense<0.000000e+00> : vector<16x32xf32>
    %142 = tpu.matmul %139, %141, %cst_25 {dimension_numbers = #tpu.dot_dimension_numbers<[1], [0], [0], [1], [0, 0, 1, 1], [], []>} : vector<16x32xbf16>, vector<32x32xbf16>, vector<16x32xf32> -> vector<16x32xf32>
    %143 = vector.extract_strided_slice %7 {offsets = [3, 0], sizes = [1, 32], strides = [1, 1]} : vector<9x32xf32> to vector<1x32xf32>
    %144 = vector.broadcast %143 : vector<1x32xf32> to vector<16x32xf32>
    %145 = arith.addf %142, %144 : vector<16x32xf32>
    %146 = arith.addf %4, %145 : vector<16x32xf32>
    %147 = vector.extract_strided_slice %7 {offsets = [4, 0], sizes = [1, 32], strides = [1, 1]} : vector<9x32xf32> to vector<1x32xf32>
    %148 = vector.extract_strided_slice %7 {offsets = [5, 0], sizes = [1, 32], strides = [1, 1]} : vector<9x32xf32> to vector<1x32xf32>
    %cst_26 = arith.constant dense<0.000000e+00> : vector<16xf32>
    %149 = vector.multi_reduction <add>, %146, %cst_26 [1] : vector<16x32xf32> to vector<16xf32>
    %150 = vector.shape_cast %149 : vector<16xf32> to vector<16x1xf32>
    %cst_27 = arith.constant 3.200000e+01 : f32
    %151 = vector.broadcast %cst_27 : f32 to vector<16x1xf32>
    %152 = arith.divf %150, %151 : vector<16x1xf32>
    %153 = vector.broadcast %152 : vector<16x1xf32> to vector<16x32xf32>
    %154 = arith.subf %146, %153 : vector<16x32xf32>
    %155 = arith.mulf %154, %154 : vector<16x32xf32>
    %cst_28 = arith.constant dense<0.000000e+00> : vector<16xf32>
    %156 = vector.multi_reduction <add>, %155, %cst_28 [1] : vector<16x32xf32> to vector<16xf32>
    %157 = vector.shape_cast %156 : vector<16xf32> to vector<16x1xf32>
    %cst_29 = arith.constant 3.200000e+01 : f32
    %158 = vector.broadcast %cst_29 : f32 to vector<16x1xf32>
    %159 = arith.divf %157, %158 : vector<16x1xf32>
    %160 = vector.broadcast %152 : vector<16x1xf32> to vector<16x32xf32>
    %161 = arith.subf %146, %160 : vector<16x32xf32>
    %cst_30 = arith.constant 9.99999974E-6 : f32
    %162 = vector.broadcast %cst_30 : f32 to vector<16x1xf32>
    %163 = arith.addf %159, %162 : vector<16x1xf32>
    %164 = math.rsqrt %163 : vector<16x1xf32>
    %165 = vector.broadcast %164 : vector<16x1xf32> to vector<16x32xf32>
    %166 = arith.mulf %161, %165 : vector<16x32xf32>
    %167 = vector.broadcast %147 : vector<1x32xf32> to vector<16x32xf32>
    %168 = arith.mulf %166, %167 : vector<16x32xf32>
    %169 = vector.broadcast %148 : vector<1x32xf32> to vector<16x32xf32>
    %170 = arith.addf %168, %169 : vector<16x32xf32>
    %171 = arith.truncf %170 : vector<16x32xf32> to vector<16x32xbf16>
    %c0_31 = arith.constant 0 : index
    %c0_32 = arith.constant 0 : index
    %c0_33 = arith.constant 0 : index
    %172 = vector.load %arg6[%c0_31, %c0_32, %c0_33] : memref<1x32x128xbf16, #tpu.memory_space<vmem>>, vector<1x32x128xbf16>
    %173 = vector.shape_cast %172 : vector<1x32x128xbf16> to vector<32x128xbf16>
    %cst_34 = arith.constant dense<0.000000e+00> : vector<16x128xf32>
    %174 = tpu.matmul %171, %173, %cst_34 {dimension_numbers = #tpu.dot_dimension_numbers<[1], [0], [0], [1], [0, 0, 1, 1], [], []>} : vector<16x32xbf16>, vector<32x128xbf16>, vector<16x128xf32> -> vector<16x128xf32>
    %c0_35 = arith.constant 0 : index
    %c0_36 = arith.constant 0 : index
    %c0_37 = arith.constant 0 : index
    %175 = vector.load %arg9[%c0_35, %c0_36, %c0_37] : memref<1x1x128xf32, #tpu.memory_space<vmem>>, vector<1x1x128xf32>
    %176 = vector.shape_cast %175 : vector<1x1x128xf32> to vector<1x128xf32>
    %177 = vector.broadcast %176 : vector<1x128xf32> to vector<16x128xf32>
    %178 = arith.addf %174, %177 : vector<16x128xf32>
    %cst_38 = arith.constant 5.000000e-01 : f32
    %179 = vector.broadcast %cst_38 : f32 to vector<16x128xf32>
    %180 = arith.mulf %179, %178 : vector<16x128xf32>
    %cst_39 = arith.constant 4.471500e-02 : f32
    %181 = vector.broadcast %cst_39 : f32 to vector<16x128xf32>
    %182 = arith.mulf %181, %178 : vector<16x128xf32>
    %183 = arith.mulf %182, %178 : vector<16x128xf32>
    %184 = arith.mulf %183, %178 : vector<16x128xf32>
    %185 = arith.addf %178, %184 : vector<16x128xf32>
    %cst_40 = arith.constant 0.797884583 : f32
    %186 = vector.broadcast %cst_40 : f32 to vector<16x128xf32>
    %187 = arith.mulf %186, %185 : vector<16x128xf32>
    %188 = math.tanh %187 : vector<16x128xf32>
    %cst_41 = arith.constant 1.000000e+00 : f32
    %189 = vector.broadcast %cst_41 : f32 to vector<16x128xf32>
    %190 = arith.addf %189, %188 : vector<16x128xf32>
    %191 = arith.mulf %180, %190 : vector<16x128xf32>
    %192 = arith.truncf %191 : vector<16x128xf32> to vector<16x128xbf16>
    %c0_42 = arith.constant 0 : index
    %c0_43 = arith.constant 0 : index
    %c0_44 = arith.constant 0 : index
    %193 = vector.load %arg7[%c0_42, %c0_43, %c0_44] : memref<1x128x32xbf16, #tpu.memory_space<vmem>>, vector<1x128x32xbf16>
    %194 = vector.shape_cast %193 : vector<1x128x32xbf16> to vector<128x32xbf16>
    %cst_45 = arith.constant dense<0.000000e+00> : vector<16x32xf32>
    %195 = tpu.matmul %192, %194, %cst_45 {dimension_numbers = #tpu.dot_dimension_numbers<[1], [0], [0], [1], [0, 0, 1, 1], [], []>} : vector<16x128xbf16>, vector<128x32xbf16>, vector<16x32xf32> -> vector<16x32xf32>
    %196 = vector.extract_strided_slice %7 {offsets = [6, 0], sizes = [1, 32], strides = [1, 1]} : vector<9x32xf32> to vector<1x32xf32>
    %197 = vector.broadcast %196 : vector<1x32xf32> to vector<16x32xf32>
    %198 = arith.addf %195, %197 : vector<16x32xf32>
    %199 = arith.addf %170, %198 : vector<16x32xf32>
    %200 = vector.extract_strided_slice %7 {offsets = [7, 0], sizes = [1, 32], strides = [1, 1]} : vector<9x32xf32> to vector<1x32xf32>
    %201 = vector.extract_strided_slice %7 {offsets = [8, 0], sizes = [1, 32], strides = [1, 1]} : vector<9x32xf32> to vector<1x32xf32>
    %cst_46 = arith.constant dense<0.000000e+00> : vector<16xf32>
    %202 = vector.multi_reduction <add>, %199, %cst_46 [1] : vector<16x32xf32> to vector<16xf32>
    %203 = vector.shape_cast %202 : vector<16xf32> to vector<16x1xf32>
    %cst_47 = arith.constant 3.200000e+01 : f32
    %204 = vector.broadcast %cst_47 : f32 to vector<16x1xf32>
    %205 = arith.divf %203, %204 : vector<16x1xf32>
    %206 = vector.broadcast %205 : vector<16x1xf32> to vector<16x32xf32>
    %207 = arith.subf %199, %206 : vector<16x32xf32>
    %208 = arith.mulf %207, %207 : vector<16x32xf32>
    %cst_48 = arith.constant dense<0.000000e+00> : vector<16xf32>
    %209 = vector.multi_reduction <add>, %208, %cst_48 [1] : vector<16x32xf32> to vector<16xf32>
    %210 = vector.shape_cast %209 : vector<16xf32> to vector<16x1xf32>
    %cst_49 = arith.constant 3.200000e+01 : f32
    %211 = vector.broadcast %cst_49 : f32 to vector<16x1xf32>
    %212 = arith.divf %210, %211 : vector<16x1xf32>
    %213 = vector.broadcast %205 : vector<16x1xf32> to vector<16x32xf32>
    %214 = arith.subf %199, %213 : vector<16x32xf32>
    %cst_50 = arith.constant 9.99999974E-6 : f32
    %215 = vector.broadcast %cst_50 : f32 to vector<16x1xf32>
    %216 = arith.addf %212, %215 : vector<16x1xf32>
    %217 = math.rsqrt %216 : vector<16x1xf32>
    %218 = vector.broadcast %217 : vector<16x1xf32> to vector<16x32xf32>
    %219 = arith.mulf %214, %218 : vector<16x32xf32>
    %220 = vector.broadcast %200 : vector<1x32xf32> to vector<16x32xf32>
    %221 = arith.mulf %219, %220 : vector<16x32xf32>
    %222 = vector.broadcast %201 : vector<1x32xf32> to vector<16x32xf32>
    %223 = arith.addf %221, %222 : vector<16x32xf32>
    %224 = vector.shape_cast %223 : vector<16x32xf32> to vector<2x8x32xf32>
    %c0_51 = arith.constant 0 : index
    %c0_52 = arith.constant 0 : index
    %c0_53 = arith.constant 0 : index
    %225 = vector.load %arg10[%c0_51, %c0_52, %c0_53] : memref<2x8x32xf32, #tpu.memory_space<vmem>>, vector<2x8x32xf32>
    tpu.vector_store %arg10[%c0_51, %c0_52, %c0_53], %224 {strides = array<i32>} : memref<2x8x32xf32, #tpu.memory_space<vmem>>, vector<2x8x32xf32>,
    return
  }
  func.func @transform_0(%arg0: i32, %arg1: i32) -> (i32, i32, i32) {
    %c0_i32 = arith.constant 0 : i32
    %c0_i32_0 = arith.constant 0 : i32
    %c0_i32_1 = arith.constant 0 : i32
    return %arg0, %c0_i32, %c0_i32_0 : i32, i32, i32
  }
  func.func @transform_1(%arg0: i32, %arg1: i32) -> (i32, i32, i32) {
    %c0_i32 = arith.constant 0 : i32
    %c0_i32_0 = arith.constant 0 : i32
    %c0_i32_1 = arith.constant 0 : i32
    return %arg0, %c0_i32, %c0_i32_0 : i32, i32, i32
  }
  func.func @transform_2(%arg0: i32, %arg1: i32) -> (i32, i32, i32) {
    %c0_i32 = arith.constant 0 : i32
    %c0_i32_0 = arith.constant 0 : i32
    %c0_i32_1 = arith.constant 0 : i32
    return %arg1, %c0_i32, %c0_i32_0 : i32, i32, i32
  }
  func.func @transform_3(%arg0: i32, %arg1: i32) -> (i32, i32, i32) {
    %c0_i32 = arith.constant 0 : i32
    %c0_i32_0 = arith.constant 0 : i32
    %c0_i32_1 = arith.constant 0 : i32
    return %arg1, %c0_i32, %c0_i32_0 : i32, i32, i32
  }
  func.func @transform_4(%arg0: i32, %arg1: i32) -> (i32, i32, i32) {
    %c0_i32 = arith.constant 0 : i32
    %c0_i32_0 = arith.constant 0 : i32
    %c0_i32_1 = arith.constant 0 : i32
    return %arg1, %c0_i32, %c0_i32_0 : i32, i32, i32
  }
  func.func @transform_5(%arg0: i32, %arg1: i32) -> (i32, i32, i32) {
    %c0_i32 = arith.constant 0 : i32
    %c0_i32_0 = arith.constant 0 : i32
    %c0_i32_1 = arith.constant 0 : i32
    return %arg1, %c0_i32, %c0_i32_0 : i32, i32, i32
  }
  func.func @transform_6(%arg0: i32, %arg1: i32) -> (i32, i32, i32) {
    %c0_i32 = arith.constant 0 : i32
    %c0_i32_0 = arith.constant 0 : i32
    %c0_i32_1 = arith.constant 0 : i32
    return %arg1, %c0_i32, %c0_i32_0 : i32, i32, i32
  }
  func.func @transform_7(%arg0: i32, %arg1: i32) -> (i32, i32, i32) {
    %c0_i32 = arith.constant 0 : i32
    %c0_i32_0 = arith.constant 0 : i32
    %c0_i32_1 = arith.constant 0 : i32
    return %arg1, %c0_i32, %c0_i32_0 : i32, i32, i32
  }
  func.func @transform_8(%arg0: i32, %arg1: i32) -> (i32, i32, i32) {
    %c0_i32 = arith.constant 0 : i32
    %c0_i32_0 = arith.constant 0 : i32
    %c0_i32_1 = arith.constant 0 : i32
    return %arg0, %c0_i32, %c0_i32_0 : i32, i32, i32
  }
}

</mosaic_0001>

<llo_original>
// kernel: tpu_custom_call.1
$region0: #{tpu_custom_call.1}
  #allocation0 [shape = 'u32[]', space=smem, size = 0x4, offset = 0x4, fixed_abs, tag = 'smem constant byte address 0x4 - core index']
  #allocation1 [shape = 'u32[144,128]{1,0:T(1,128)}', space=vmem, size = 0x12000, scoped, tag = 'internal scratch']
  %s0 = inlined_call_operand.vmem [shape: f32[2,8,32], index: 0, kind: input, shape index: {}]
  %s1 = inlined_call_operand.vmem [shape: f32[2,1,8], index: 1, kind: input, shape index: {}]
  %s2 = inlined_call_operand.vmem [shape: bf16[2,32,96], index: 2, kind: input, shape index: {}]
  %s3 = inlined_call_operand.vmem [shape: bf16[2,32,32], index: 3, kind: input, shape index: {}]
  %s4 = inlined_call_operand.vmem [shape: bf16[2,32,128], index: 4, kind: input, shape index: {}]
  %s5 = inlined_call_operand.vmem [shape: bf16[2,128,32], index: 5, kind: input, shape index: {}]
  %s6 = inlined_call_operand.vmem [shape: f32[2,9,32], index: 6, kind: input, shape index: {}]
  %s7 = inlined_call_operand.vmem [shape: f32[2,1,128], index: 7, kind: input, shape index: {}]
  %s8 = inlined_call_operand.hbm [shape: f32[2,8,32], index: 8, kind: output, shape index: {}]
  %s9 = sld [smem:[#allocation0]]
  $region69: #{tpu_custom_call.1} parent=0
    _
  %s11 = ssub.s32 1, %s9
  %s12 = scalar_select 0, %s11, %s9
  $region1: #{tpu_custom_call.1} parent=0
    #allocation2 [shape = 'u8[8192]{0}', space=vmem, size = 0x2000, scoped, tag = 'output window, operand 0, single buffered']
    #allocation3 [shape = 's32[2]{0}', space=sflag, size = 0x8, scoped, tag = 'scoped memory for tpu_custom_call.1']
    %13 = vsyncpa [#allocation3], 0
    loop: start=0, step=1, limit=4
    $region2: #{tpu_custom_call.1} parent=1 // loop_pre_header
      _
    $region3: #{tpu_custom_call.1} parent=1 // loop_header
      %s15 = sphi 0, %s19
      %p16 = scmp.ge.s32.totalorder %s15, 4
      %s22 = sphi 0, %s34
      %s23 = sphi 0, %s30
      %s24 = sphi 0, %s22
      %s25 = sphi 0, %s23
      %s26 = sphi 0, %s24
      %s27 = sphi 0, %s25
      %s37 = sphi 0, %s39
      %s40 = sphi 0, %s37
      %s41 = sphi 0, %s40
      %s57 = sphi 0, %s41
      %s63 = sphi 0, %s65
      %s66 = sphi 0, %s63
      %s67 = sphi 0, %s66
      %s83 = sphi 0, %s67
      %s89 = sphi 0, %s91
      %s92 = sphi 0, %s89
      %s93 = sphi 0, %s92
      %s109 = sphi 0, %s93
      %s115 = sphi 0, %s117
      %s118 = sphi 0, %s115
      %s119 = sphi 0, %s118
      %s135 = sphi 0, %s119
      %s141 = sphi 0, %s143
      %s144 = sphi 0, %s141
      %s145 = sphi 0, %s144
      %s161 = sphi 0, %s145
      %s167 = sphi 0, %s169
      %s170 = sphi 0, %s167
      %s171 = sphi 0, %s170
      %s187 = sphi 0, %s171
      %s193 = sphi 0, %s195
      %s196 = sphi 0, %s193
      %s197 = sphi 0, %s196
      %s213 = sphi 0, %s197
      %s219 = sphi 0, %s221
      %s222 = sphi 0, %s219
      %s223 = sphi 0, %s222
      %s239 = sphi 0, %s223
      %s245 = sphi 0, %s247
      %s248 = sphi 0, %s245
      %s249 = sphi 0, %s248
      %s265 = sphi 0, %s249
    $region4: #{tpu_custom_call.1} parent=1 // loop_header_branch
      %18 = sbr.rel (%p16) target = $region8
    $region5: #{tpu_custom_call.1} parent=1 // loop_body
      %s20 = ssub.s32 %s15, 1
      %s21 = ssub.s32 %s15, 2
      %s28 = sadd.s32 1, %s23
      %p29 = scmp.ge.s32.totalorder %s28, 2
      %s30 = scalar_select %p29, 0, %s28
      %s31 = sadd.s32 1, %s22
      %s32 = scalar_select %p29, %s31, %s22
      %p33 = scmp.ge.s32.totalorder %s32, 1
      %s34 = scalar_select %p33, 0, %s32
      %s35 = ssub.s32 %s22, %s34
      %p36 = scmp.eq.s32.totalorder %s35, 0
      %s38 = sadd.s32 %s37, 1
      %s39 = scalar_select %p36, %s37, %s38
      %p42 = pneg %p36
      %p43 = scmp.eq.s32.totalorder %s15, 1
      %p44 = por %p42, %p43
      %p45 = scmp.ne.s32.totalorder %s37, %s40
      %p46 = scmp.eq.s32.totalorder %s15, 0
      %p47 = por %p45, %p46
      %p48 = scmp.ne.s32.totalorder %s37, %s40
      %p49 = scmp.eq.s32.totalorder %s20, 1
      %p50 = por %p48, %p49
      %p51 = scmp.ne.s32.totalorder %s40, %s41
      %p52 = scmp.eq.s32.totalorder %s20, 0
      %p53 = por %p51, %p52
      %p54 = scmp.ne.s32.totalorder %s40, %s41
      %p55 = scmp.eq.s32.totalorder %s21, 1
      %p56 = por %p54, %p55
      %p58 = scmp.ne.s32.totalorder %s41, %s57
      %p59 = scmp.eq.s32.totalorder %s21, 0
      %p60 = por %p58, %p59
      %s61 = ssub.s32 %s22, %s34
      %p62 = scmp.eq.s32.totalorder %s61, 0
      %s64 = sadd.s32 %s63, 1
      %s65 = scalar_select %p62, %s63, %s64
      %p68 = pneg %p62
      %p69 = scmp.eq.s32.totalorder %s15, 1
      %p70 = por %p68, %p69
      %p71 = scmp.ne.s32.totalorder %s63, %s66
      %p72 = scmp.eq.s32.totalorder %s15, 0
      %p73 = por %p71, %p72
      %p74 = scmp.ne.s32.totalorder %s63, %s66
      %p75 = scmp.eq.s32.totalorder %s20, 1
      %p76 = por %p74, %p75
      %p77 = scmp.ne.s32.totalorder %s66, %s67
      %p78 = scmp.eq.s32.totalorder %s20, 0
      %p79 = por %p77, %p78
      %p80 = scmp.ne.s32.totalorder %s66, %s67
      %p81 = scmp.eq.s32.totalorder %s21, 1
      %p82 = por %p80, %p81
      %p84 = scmp.ne.s32.totalorder %s67, %s83
      %p85 = scmp.eq.s32.totalorder %s21, 0
      %p86 = por %p84, %p85
      %s87 = ssub.s32 %s23, %s30
      %p88 = scmp.eq.s32.totalorder %s87, 0
      %s90 = sadd.s32 %s89, 1
      %s91 = scalar_select %p88, %s89, %s90
      %p94 = pneg %p88
      %p95 = scmp.eq.s32.totalorder %s15, 1
      %p96 = por %p94, %p95
      %p97 = scmp.ne.s32.totalorder %s89, %s92
      %p98 = scmp.eq.s32.totalorder %s15, 0
      %p99 = por %p97, %p98
      %p100 = scmp.ne.s32.totalorder %s89, %s92
      %p101 = scmp.eq.s32.totalorder %s20, 1
      %p102 = por %p100, %p101
      %p103 = scmp.ne.s32.totalorder %s92, %s93
      %p104 = scmp.eq.s32.totalorder %s20, 0
      %p105 = por %p103, %p104
      %p106 = scmp.ne.s32.totalorder %s92, %s93
      %p107 = scmp.eq.s32.totalorder %s21, 1
      %p108 = por %p106, %p107
      %p110 = scmp.ne.s32.totalorder %s93, %s109
      %p111 = scmp.eq.s32.totalorder %s21, 0
      %p112 = por %p110, %p111
      %s113 = ssub.s32 %s23, %s30
      %p114 = scmp.eq.s32.totalorder %s113, 0
      %s116 = sadd.s32 %s115, 1
      %s117 = scalar_select %p114, %s115, %s116
      %p120 = pneg %p114
      %p121 = scmp.eq.s32.totalorder %s15, 1
      %p122 = por %p120, %p121
      %p123 = scmp.ne.s32.totalorder %s115, %s118
      %p124 = scmp.eq.s32.totalorder %s15, 0
      %p125 = por %p123, %p124
      %p126 = scmp.ne.s32.totalorder %s115, %s118
      %p127 = scmp.eq.s32.totalorder %s20, 1
      %p128 = por %p126, %p127
      %p129 = scmp.ne.s32.totalorder %s118, %s119
      %p130 = scmp.eq.s32.totalorder %s20, 0
      %p131 = por %p129, %p130
      %p132 = scmp.ne.s32.totalorder %s118, %s119
      %p133 = scmp.eq.s32.totalorder %s21, 1
      %p134 = por %p132, %p133
      %p136 = scmp.ne.s32.totalorder %s119, %s135
      %p137 = scmp.eq.s32.totalorder %s21, 0
      %p138 = por %p136, %p137
      %s139 = ssub.s32 %s23, %s30
      %p140 = scmp.eq.s32.totalorder %s139, 0
      %s142 = sadd.s32 %s141, 1
      %s143 = scalar_select %p140, %s141, %s142
      %p146 = pneg %p140
      %p147 = scmp.eq.s32.totalorder %s15, 1
      %p148 = por %p146, %p147
      %p149 = scmp.ne.s32.totalorder %s141, %s144
      %p150 = scmp.eq.s32.totalorder %s15, 0
      %p151 = por %p149, %p150
      %p152 = scmp.ne.s32.totalorder %s141, %s144
      %p153 = scmp.eq.s32.totalorder %s20, 1
      %p154 = por %p152, %p153
      %p155 = scmp.ne.s32.totalorder %s144, %s145
      %p156 = scmp.eq.s32.totalorder %s20, 0
      %p157 = por %p155, %p156
      %p158 = scmp.ne.s32.totalorder %s144, %s145
      %p159 = scmp.eq.s32.totalorder %s21, 1
      %p160 = por %p158, %p159
      %p162 = scmp.ne.s32.totalorder %s145, %s161
      %p163 = scmp.eq.s32.totalorder %s21, 0
      %p164 = por %p162, %p163
      %s165 = ssub.s32 %s23, %s30
      %p166 = scmp.eq.s32.totalorder %s165, 0
      %s168 = sadd.s32 %s167, 1
      %s169 = scalar_select %p166, %s167, %s168
      %p172 = pneg %p166
      %p173 = scmp.eq.s32.totalorder %s15, 1
      %p174 = por %p172, %p173
      %p175 = scmp.ne.s32.totalorder %s167, %s170
      %p176 = scmp.eq.s32.totalorder %s15, 0
      %p177 = por %p175, %p176
      %p178 = scmp.ne.s32.totalorder %s167, %s170
      %p179 = scmp.eq.s32.totalorder %s20, 1
      %p180 = por %p178, %p179
      %p181 = scmp.ne.s32.totalorder %s170, %s171
      %p182 = scmp.eq.s32.totalorder %s20, 0
      %p183 = por %p181, %p182
      %p184 = scmp.ne.s32.totalorder %s170, %s171
      %p185 = scmp.eq.s32.totalorder %s21, 1
      %p186 = por %p184, %p185
      %p188 = scmp.ne.s32.totalorder %s171, %s187
      %p189 = scmp.eq.s32.totalorder %s21, 0
      %p190 = por %p188, %p189
      %s191 = ssub.s32 %s23, %s30
      %p192 = scmp.eq.s32.totalorder %s191, 0
      %s194 = sadd.s32 %s193, 1
      %s195 = scalar_select %p192, %s193, %s194
      %p198 = pneg %p192
      %p199 = scmp.eq.s32.totalorder %s15, 1
      %p200 = por %p198, %p199
      %p201 = scmp.ne.s32.totalorder %s193, %s196
      %p202 = scmp.eq.s32.totalorder %s15, 0
      %p203 = por %p201, %p202
      %p204 = scmp.ne.s32.totalorder %s193, %s196
      %p205 = scmp.eq.s32.totalorder %s20, 1
      %p206 = por %p204, %p205
      %p207 = scmp.ne.s32.totalorder %s196, %s197
      %p208 = scmp.eq.s32.totalorder %s20, 0
      %p209 = por %p207, %p208
      %p210 = scmp.ne.s32.totalorder %s196, %s197
      %p211 = scmp.eq.s32.totalorder %s21, 1
      %p212 = por %p210, %p211
      %p214 = scmp.ne.s32.totalorder %s197, %s213
      %p215 = scmp.eq.s32.totalorder %s21, 0
      %p216 = por %p214, %p215
      %s217 = ssub.s32 %s23, %s30
      %p218 = scmp.eq.s32.totalorder %s217, 0
      %s220 = sadd.s32 %s219, 1
      %s221 = scalar_select %p218, %s219, %s220
      %p224 = pneg %p218
      %p225 = scmp.eq.s32.totalorder %s15, 1
      %p226 = por %p224, %p225
      %p227 = scmp.ne.s32.totalorder %s219, %s222
      %p228 = scmp.eq.s32.totalorder %s15, 0
      %p229 = por %p227, %p228
      %p230 = scmp.ne.s32.totalorder %s219, %s222
      %p231 = scmp.eq.s32.totalorder %s20, 1
      %p232 = por %p230, %p231
      %p233 = scmp.ne.s32.totalorder %s222, %s223
      %p234 = scmp.eq.s32.totalorder %s20, 0
      %p235 = por %p233, %p234
      %p236 = scmp.ne.s32.totalorder %s222, %s223
      %p237 = scmp.eq.s32.totalorder %s21, 1
      %p238 = por %p236, %p237
      %p240 = scmp.ne.s32.totalorder %s223, %s239
      %p241 = scmp.eq.s32.totalorder %s21, 0
      %p242 = por %p240, %p241
      %s243 = ssub.s32 %s22, %s34
      %p244 = scmp.eq.s32.totalorder %s243, 0
      %s246 = sadd.s32 %s245, 1
      %s247 = scalar_select %p244, %s245, %s246
      %p250 = pneg %p244
      %p251 = scmp.eq.s32.totalorder %s15, 1
      %p252 = por %p250, %p251
      %p253 = scmp.ne.s32.totalorder %s245, %s248
      %p254 = scmp.eq.s32.totalorder %s15, 0
      %p255 = por %p253, %p254
      %p256 = scmp.ne.s32.totalorder %s245, %s248
      %p257 = scmp.eq.s32.totalorder %s20, 1
      %p258 = por %p256, %p257
      %p259 = scmp.ne.s32.totalorder %s248, %s249
      %p260 = scmp.eq.s32.totalorder %s20, 0
      %p261 = por %p259, %p260
      %p262 = scmp.ne.s32.totalorder %s248, %s249
      %p263 = scmp.eq.s32.totalorder %s21, 1
      %p264 = por %p262, %p263
      %p266 = scmp.ne.s32.totalorder %s249, %s265
      %p267 = scmp.eq.s32.totalorder %s21, 0
      %p268 = por %p266, %p267
      %p269 = scmp.le.s32.totalorder 1, %s15
      %p270 = scmp.lt.s32.totalorder %s15, 3
      %p271 = pnand %p269, %p270
      %p272 = pneg %p271
      // Predicated region
      $region9: #{tpu_custom_call.1} parent=5 // pred_check
        _
      $region10: #{tpu_custom_call.1} parent=5 // pred_check_branch
        %274 = sbr.rel (%p271) target = $region12
      $region11: #{tpu_custom_call.1} parent=5 // pred_region
        %s275 = ssub.s32 %s15, 1
        // Predicated region
        $region13: #{tpu_custom_call.1} parent=11 // pred_check
          %p276 = pneg %p53
        $region14: #{tpu_custom_call.1} parent=11 // pred_check_branch
          %278 = sbr.rel (%p276) target = $region16
        $region15: #{tpu_custom_call.1} parent=11 // pred_region
          %s279 = smul.u32 2, %s24
          %p280 = scmp.lt.s32.totalorder %s279, 1
          %s281 = scalar_select %p280, %s279, 1
          %s282 = smul.addr %s281, 8
          %s283 = scalar_lea.vmem %s0, %s282
          %s284 = smul.u32 2, %s24
        $region16: #{tpu_custom_call.1} parent=11 // pred_fallthru
          _
        // Predicated region
        $region17: #{tpu_custom_call.1} parent=11 // pred_check
          %p285 = pneg %p79
        $region18: #{tpu_custom_call.1} parent=11 // pred_check_branch
          %287 = sbr.rel (%p285) target = $region20
        $region19: #{tpu_custom_call.1} parent=11 // pred_region
          %s288 = smul.u32 2, %s24
          %p289 = scmp.lt.s32.totalorder %s288, 1
          %s290 = scalar_select %p289, %s288, 1
          %s291 = scalar_lea.vmem %s1, %s290
          %s292 = smul.u32 2, %s24
        $region20: #{tpu_custom_call.1} parent=11 // pred_fallthru
          _
      $region12: #{tpu_custom_call.1} parent=5 // pred_fallthru
        _
      %p293 = scmp.lt.s32.totalorder %s15, 2
      // Predicated region
      $region21: #{tpu_custom_call.1} parent=5 // pred_check
        %p294 = pneg %p293
      $region22: #{tpu_custom_call.1} parent=5 // pred_check_branch
        %296 = sbr.rel (%p294) target = $region24
      $region23: #{tpu_custom_call.1} parent=5 // pred_region
        // Predicated region
        $region25: #{tpu_custom_call.1} parent=23 // pred_check
          %p297 = pneg %p99
        $region26: #{tpu_custom_call.1} parent=23 // pred_check_branch
          %299 = sbr.rel (%p297) target = $region28
        $region27: #{tpu_custom_call.1} parent=23 // pred_region
          %p300 = scmp.lt.s32.totalorder %s23, 1
          %s301 = scalar_select %p300, %s23, 1
          %s302 = smul.addr %s301, 4
          %s303 = smul.addr %s302, 4
          %s304 = scalar_lea.vmem %s2, %s303
        $region28: #{tpu_custom_call.1} parent=23 // pred_fallthru
          _
        // Predicated region
        $region29: #{tpu_custom_call.1} parent=23 // pred_check
          %p305 = pneg %p125
        $region30: #{tpu_custom_call.1} parent=23 // pred_check_branch
          %307 = sbr.rel (%p305) target = $region32
        $region31: #{tpu_custom_call.1} parent=23 // pred_region
          %p308 = scmp.lt.s32.totalorder %s23, 1
          %s309 = scalar_select %p308, %s23, 1
          %s310 = smul.addr %s309, 4
          %s311 = smul.addr %s310, 4
          %s312 = scalar_lea.vmem %s3, %s311
        $region32: #{tpu_custom_call.1} parent=23 // pred_fallthru
          _
        // Predicated region
        $region33: #{tpu_custom_call.1} parent=23 // pred_check
          %p313 = pneg %p151
        $region34: #{tpu_custom_call.1} parent=23 // pred_check_branch
          %315 = sbr.rel (%p313) target = $region36
        $region35: #{tpu_custom_call.1} parent=23 // pred_region
          %p316 = scmp.lt.s32.totalorder %s23, 1
          %s317 = scalar_select %p316, %s23, 1
          %s318 = smul.addr %s317, 4
          %s319 = smul.addr %s318, 4
          %s320 = scalar_lea.vmem %s4, %s319
        $region36: #{tpu_custom_call.1} parent=23 // pred_fallthru
          _
        // Predicated region
        $region37: #{tpu_custom_call.1} parent=23 // pred_check
          %p321 = pneg %p177
        $region38: #{tpu_custom_call.1} parent=23 // pred_check_branch
          %323 = sbr.rel (%p321) target = $region40
        $region39: #{tpu_custom_call.1} parent=23 // pred_region
          %p324 = scmp.lt.s32.totalorder %s23, 1
          %s325 = scalar_select %p324, %s23, 1
          %s326 = smul.addr %s325, 16
          %s327 = smul.addr %s326, 4
          %s328 = scalar_lea.vmem %s5, %s327
        $region40: #{tpu_custom_call.1} parent=23 // pred_fallthru
          _
        // Predicated region
        $region41: #{tpu_custom_call.1} parent=23 // pred_check
          %p329 = pneg %p203
        $region42: #{tpu_custom_call.1} parent=23 // pred_check_branch
          %331 = sbr.rel (%p329) target = $region44
        $region43: #{tpu_custom_call.1} parent=23 // pred_region
          %p332 = scmp.lt.s32.totalorder %s23, 1
          %s333 = scalar_select %p332, %s23, 1
          %s334 = smul.addr %s333, 2
          %s335 = smul.addr %s334, 8
          %s336 = scalar_lea.vmem %s6, %s335
        $region44: #{tpu_custom_call.1} parent=23 // pred_fallthru
          _
        // Predicated region
        $region45: #{tpu_custom_call.1} parent=23 // pred_check
          %p337 = pneg %p229
        $region46: #{tpu_custom_call.1} parent=23 // pred_check_branch
          %339 = sbr.rel (%p337) target = $region48
        $region47: #{tpu_custom_call.1} parent=23 // pred_region
          %p340 = scmp.lt.s32.totalorder %s23, 1
          %s341 = scalar_select %p340, %s23, 1
          %s342 = scalar_lea.vmem %s7, %s341
        $region48: #{tpu_custom_call.1} parent=23 // pred_fallthru
          _
      $region24: #{tpu_custom_call.1} parent=5 // pred_fallthru
        _
      %p343 = scmp.le.s32.totalorder 1, %s15
      %p344 = scmp.lt.s32.totalorder %s15, 3
      %p345 = pnand %p343, %p344
      %p346 = pneg %p345
      // Predicated region
      $region49: #{tpu_custom_call.1} parent=5 // pred_check
        _
      $region50: #{tpu_custom_call.1} parent=5 // pred_check_branch
        %348 = sbr.rel (%p345) target = $region52
      $region51: #{tpu_custom_call.1} parent=5 // pred_region
        %s349 = ssub.s32 %s15, 1
        %s350 = smul.u32 2, %s24
        %p351 = scmp.lt.s32.totalorder %s350, 1
        %s352 = scalar_select %p351, %s350, 1
        %s353 = smul.addr %s352, 8
        %s354 = scalar_lea.vmem %s0, %s353
        %p355 = pneg %p53
        %p356 = pneg %p50
        %s357 = smul.u32 2, %s24
        %p358 = scmp.lt.s32.totalorder %s357, 1
        %s359 = scalar_select %p358, %s357, 1
        %s360 = scalar_lea.vmem %s1, %s359
        %p361 = pneg %p79
        %p362 = pneg %p76
        %p363 = scmp.lt.s32.totalorder %s25, 1
        %s364 = scalar_select %p363, %s25, 1
        %s365 = smul.addr %s364, 4
        %s366 = smul.addr %s365, 4
        %s367 = scalar_lea.vmem %s2, %s366
        %p368 = pneg %p105
        %p369 = pneg %p102
        %p370 = scmp.lt.s32.totalorder %s25, 1
        %s371 = scalar_select %p370, %s25, 1
        %s372 = smul.addr %s371, 4
        %s373 = smul.addr %s372, 4
        %s374 = scalar_lea.vmem %s3, %s373
        %p375 = pneg %p131
        %p376 = pneg %p128
        %p377 = scmp.lt.s32.totalorder %s25, 1
        %s378 = scalar_select %p377, %s25, 1
        %s379 = smul.addr %s378, 4
        %s380 = smul.addr %s379, 4
        %s381 = scalar_lea.vmem %s4, %s380
        %p382 = pneg %p157
        %p383 = pneg %p154
        %p384 = scmp.lt.s32.totalorder %s25, 1
        %s385 = scalar_select %p384, %s25, 1
        %s386 = smul.addr %s385, 16
        %s387 = smul.addr %s386, 4
        %s388 = scalar_lea.vmem %s5, %s387
        %p389 = pneg %p183
        %p390 = pneg %p180
        %p391 = scmp.lt.s32.totalorder %s25, 1
        %s392 = scalar_select %p391, %s25, 1
        %s393 = smul.addr %s392, 2
        %s394 = smul.addr %s393, 8
        %s395 = scalar_lea.vmem %s6, %s394
        %p396 = pneg %p209
        %p397 = pneg %p206
        %p398 = scmp.lt.s32.totalorder %s25, 1
        %s399 = scalar_select %p398, %s25, 1
        %s400 = scalar_lea.vmem %s7, %s399
        %p401 = pneg %p235
        %p402 = pneg %p232
        %p403 = pneg %p261
        %p404 = pneg %p258
        %s405 = smul.u32 2, %s24
        %p406 = scmp.lt.s32.totalorder %s405, 1
        %s407 = scalar_select %p406, %s405, 1
        %s408 = smul.addr %s407, 8
        %s409 = scalar_lea.vmem %s0, %s408
        %s410 = smul.u32 2, %s24
        %s411 = smul.u32 2, %s24
        %p412 = scmp.lt.s32.totalorder %s411, 1
        %s413 = scalar_select %p412, %s411, 1
        %s414 = scalar_lea.vmem %s1, %s413
        %s415 = smul.u32 2, %s24
        %p416 = scmp.lt.s32.totalorder %s25, 1
        %s417 = scalar_select %p416, %s25, 1
        %s418 = smul.addr %s417, 4
        %s419 = smul.addr %s418, 4
        %s420 = scalar_lea.vmem %s2, %s419
        %p421 = scmp.lt.s32.totalorder %s25, 1
        %s422 = scalar_select %p421, %s25, 1
        %s423 = smul.addr %s422, 4
        %s424 = smul.addr %s423, 4
        %s425 = scalar_lea.vmem %s3, %s424
        %p426 = scmp.lt.s32.totalorder %s25, 1
        %s427 = scalar_select %p426, %s25, 1
        %s428 = smul.addr %s427, 4
        %s429 = smul.addr %s428, 4
        %s430 = scalar_lea.vmem %s4, %s429
        %p431 = scmp.lt.s32.totalorder %s25, 1
        %s432 = scalar_select %p431, %s25, 1
        %s433 = smul.addr %s432, 16
        %s434 = smul.addr %s433, 4
        %s435 = scalar_lea.vmem %s5, %s434
        %p436 = scmp.lt.s32.totalorder %s25, 1
        %s437 = scalar_select %p436, %s25, 1
        %s438 = smul.addr %s437, 2
        %s439 = smul.addr %s438, 8
        %s440 = scalar_lea.vmem %s6, %s439
        %p441 = scmp.lt.s32.totalorder %s25, 1
        %s442 = scalar_select %p441, %s25, 1
        %s443 = scalar_lea.vmem %s7, %s442
        %s444 = smul.u32 2, %s24
        %p446 = scmp.eq.s32.totalorder %s25, 0
        // Predicated region
        $region53: #{tpu_custom_call.1} parent=51 // pred_check
          %p447 = pneg %p446
        $region54: #{tpu_custom_call.1} parent=51 // pred_check_branch
          %449 = sbr.rel (%p447) target = $region56
        $region55: #{tpu_custom_call.1} parent=51 // pred_region
          %v450 = vld [vmem:[%s409] sm:$0xff]
          %v451 = vld [vmem:[%s409 + $0x8] sm:$0xff]
          %vm452 = vcmask 261120
          %453 = vst.msk [vmem:[#allocation2] sm:$0xff] %vm452, %v450
          %454 = vst.msk [vmem:[#allocation2 + $0x8] sm:$0xff] %vm452, %v451
        $region56: #{tpu_custom_call.1} parent=51 // pred_fallthru
          _
        %v455 = vld [vmem:[#allocation2] sm:$0xff]
        %v456 = vld [vmem:[#allocation2 + $0x8] sm:$0xff]
        %v457 = vpack.c.bf16 %v456, %v455
        %v458 = vld [vmem:[%s440] sm:$0xff]
        %v459 = vld [vmem:[%s440 + $0x8] sm:$0x1]
        %v461 = vrot.slane %v458, 1
        %462 = vrot.lane.b32.xlu0 %v461, 32
        %v463 = vpop.permute.xlu0 %462
        %v465 = vrot.slane %v458, 2
        %466 = vrot.lane.b32.xlu0 %v465, 64
        %v467 = vpop.permute.xlu0 %466
        %vm469 = vcmask 261120
        %v470 = vsel %vm469, %v458, %v463
        %vm471 = vcmask 523264
        %v472 = vsel %vm471, %v470, %v467
        %v473 = vld [vmem:[%s420] sm:$0xf]
        %v474 = vld [vmem:[%s420 + $0x4] sm:$0xf]
        %v475 = vld [vmem:[%s420 + $0x8] sm:$0xf]
        %v476 = vld [vmem:[%s420 + $0xc] sm:$0xf]
        %v477 = vlaneseq
        %v478 = vshrl.u32 %v477, 7
        %v479 = vsub.s32 0, %v478
        %v480 = vrot.slane %v472, %v479
        %v485 = vunpack.c.l.b16 %v473
        %v486 = vunpack.c.l.b16 %v474
        %v487 = vunpack.c.l.b16 %v475
        %v488 = vunpack.c.l.b16 %v476
        %v489 = vpack.c.b16 %v486, %v485
        %v490 = vpack.c.b16 %v488, %v487
        %v494 = vsel %vm469, %v457, 0
        %496 = vmatprep.subr.bf16.mxu0 0
        %497 = vmatpush1.bf16.msra.mxu0 0
        %498 = vmatprep.subr.bf16.mxu0 0
        %499 = vmatpush1.bf16.msra.mxu0 0
        %500 = vmatprep.subr.bf16.mxu0 0
        %501 = vmatpush1.bf16.msra.mxu0 0
        %502 = vmatprep.subr.bf16.mxu0 0
        %503 = vmatpush1.bf16.msra.mxu0 0
        %504 = vmatprep.subr.bf16.mxu0 0
        %505 = vmatpush1.bf16.msra.mxu0 0
        %506 = vmatprep.subr.bf16.mxu0 0
        %507 = vmatpush1.bf16.msra.mxu0 0
        %508 = vmatprep.subr.bf16.mxu0 0
        %509 = vmatpush1.bf16.msra.mxu0 %v490
        %510 = vmatprep.subr.bf16.mxu0 0
        %511 = vmatpush1.bf16.msra.mxu0 %v489
        %512 = vmatprep.subr.bf16.mxu0 0
        %513 = vmatpush2.bf16.msra.mxu0 0
        %514 = vmatprep.subr.bf16.mxu0 0
        %515 = vmatpush2.bf16.msra.mxu0 0
        %516 = vmatprep.subr.bf16.mxu0 0
        %517 = vmatpush2.bf16.msra.mxu0 0
        %518 = vmatprep.subr.bf16.mxu0 0
        %519 = vmatpush2.bf16.msra.mxu0 0
        %520 = vmatprep.subr.bf16.mxu0 0
        %521 = vmatpush2.bf16.msra.mxu0 0
        %522 = vmatprep.subr.bf16.mxu0 0
        %523 = vmatpush2.bf16.msra.mxu0 0
        %524 = vmatprep.subr.bf16.mxu0 0
        %525 = vmatpush2.bf16.msra.mxu0 0
        %526 = vmatprep.subr.bf16.mxu0 0
        %527 = vmatpush2.bf16.msra.mxu0 0
        %528 = vmatprep.mubr.bf16.mxu0 0
        %529 = vmatmul.mubr.bf16.gmra.mxu0 %v494
        %v530 = vpop.f32.mrf.mxu0
        %v531 = vadd.f32 %v480, %v530
        %v532 = vpop.f32.mrf.mxu0
        %v533 = vpop.f32.mrf.mxu0
        %v534 = vadd.f32 %v480, %v533
        %v535 = vpop.f32.mrf.mxu0
        %536 = vdwg.mxu0
        %v537 = vld [vmem:[%s414] sm:$0x1]
        %v538 = vld [vmem:[%s414 + $0x1] sm:$0x1]
        %540 = vrot.lane.b32.xlu0 %v531, 120
        %v541 = vpop.permute.xlu0 %540
        %543 = vrot.lane.b32.xlu0 %v531, 112
        %v544 = vpop.permute.xlu0 %543
        %546 = vrot.lane.b32.xlu0 %v531, 104
        %v547 = vpop.permute.xlu0 %546
        %v549 = vpack.c.bf16 %v531, %v531
        %v550 = vpack.c.bf16 %v541, %v541
        %v551 = vpack.c.bf16 %v544, %v544
        %v552 = vpack.c.bf16 %v547, %v547
        %v553 = vmul.f32 %v537, -1e+09
        %v555 = vlaneseq
        %v556 = vshrl.u32 %v555, 7
        %v557 = vsub.s32 0, %v556
        %v558 = vrot.slane %v553, %v557
        %561 = vrot.lane.b32.xlu0 %v549, 96
        %v562 = vpop.permute.xlu0 %561
        %vm563 = vcmask 64512
        %v565 = vsel %vm563, %v549, 0
        %v568 = vsel %vm563, %v562, 0
        %570 = vmatprep.subr.bf16.mxu0 0
        %571 = vmatpush1.bf16.xpose.msra.mxu0 0
        %572 = vmatprep.subr.bf16.mxu0 0
        %573 = vmatpush1.bf16.xpose.msra.mxu0 0
        %574 = vmatprep.subr.bf16.mxu0 0
        %575 = vmatpush1.bf16.xpose.msra.mxu0 0
        %576 = vmatprep.subr.bf16.mxu0 0
        %577 = vmatpush1.bf16.xpose.msra.mxu0 0
        %578 = vmatprep.subr.bf16.mxu0 0
        %579 = vmatpush1.bf16.xpose.msra.mxu0 0
        %580 = vmatprep.subr.bf16.mxu0 0
        %581 = vmatpush1.bf16.xpose.msra.mxu0 0
        %582 = vmatprep.subr.bf16.mxu0 0
        %583 = vmatpush1.bf16.xpose.msra.mxu0 0
        %584 = vmatprep.subr.bf16.mxu0 0
        %585 = vmatpush1.bf16.xpose.msra.mxu0 %v568
        %586 = vmatprep.subr.bf16.mxu0 0
        %587 = vmatpush2.bf16.xpose.msra.mxu0 0
        %588 = vmatprep.subr.bf16.mxu0 0
        %589 = vmatpush2.bf16.xpose.msra.mxu0 0
        %590 = vmatprep.subr.bf16.mxu0 0
        %591 = vmatpush2.bf16.xpose.msra.mxu0 0
        %592 = vmatprep.subr.bf16.mxu0 0
        %593 = vmatpush2.bf16.xpose.msra.mxu0 0
        %594 = vmatprep.subr.bf16.mxu0 0
        %595 = vmatpush2.bf16.xpose.msra.mxu0 0
        %596 = vmatprep.subr.bf16.mxu0 0
        %597 = vmatpush2.bf16.xpose.msra.mxu0 0
        %598 = vmatprep.subr.bf16.mxu0 0
        %599 = vmatpush2.bf16.xpose.msra.mxu0 0
        %600 = vmatprep.subr.bf16.mxu0 0
        %601 = vmatpush2.bf16.xpose.msra.mxu0 0
        %602 = vmatprep.mubr.bf16.mxu0 0
        %603 = vmatmul.mubr.bf16.gmra.mxu0 %v565
        %v604 = vpop.f32.mrf.mxu0
        %v605 = vadd.f32 %v558, %v604
        %v606 = vpop.f32.mrf.mxu0
        %v607 = vpop.f32.mrf.mxu0
        %v608 = vpop.f32.mrf.mxu0
        %609 = vdwg.mxu0
        %611 = vrot.lane.b32.xlu0 %v550, 96
        %v612 = vpop.permute.xlu0 %611
        %v614 = vsel %vm563, %v550, 0
        %v617 = vsel %vm563, %v612, 0
        %619 = vmatprep.subr.bf16.mxu0 0
        %620 = vmatpush1.bf16.xpose.msra.mxu0 0
        %621 = vmatprep.subr.bf16.mxu0 0
        %622 = vmatpush1.bf16.xpose.msra.mxu0 0
        %623 = vmatprep.subr.bf16.mxu0 0
        %624 = vmatpush1.bf16.xpose.msra.mxu0 0
        %625 = vmatprep.subr.bf16.mxu0 0
        %626 = vmatpush1.bf16.xpose.msra.mxu0 0
        %627 = vmatprep.subr.bf16.mxu0 0
        %628 = vmatpush1.bf16.xpose.msra.mxu0 0
        %629 = vmatprep.subr.bf16.mxu0 0
        %630 = vmatpush1.bf16.xpose.msra.mxu0 0
        %631 = vmatprep.subr.bf16.mxu0 0
        %632 = vmatpush1.bf16.xpose.msra.mxu0 0
        %633 = vmatprep.subr.bf16.mxu0 0
        %634 = vmatpush1.bf16.xpose.msra.mxu0 %v617
        %635 = vmatprep.subr.bf16.mxu0 0
        %636 = vmatpush2.bf16.xpose.msra.mxu0 0
        %637 = vmatprep.subr.bf16.mxu0 0
        %638 = vmatpush2.bf16.xpose.msra.mxu0 0
        %639 = vmatprep.subr.bf16.mxu0 0
        %640 = vmatpush2.bf16.xpose.msra.mxu0 0
        %641 = vmatprep.subr.bf16.mxu0 0
        %642 = vmatpush2.bf16.xpose.msra.mxu0 0
        %643 = vmatprep.subr.bf16.mxu0 0
        %644 = vmatpush2.bf16.xpose.msra.mxu0 0
        %645 = vmatprep.subr.bf16.mxu0 0
        %646 = vmatpush2.bf16.xpose.msra.mxu0 0
        %647 = vmatprep.subr.bf16.mxu0 0
        %648 = vmatpush2.bf16.xpose.msra.mxu0 0
        %649 = vmatprep.subr.bf16.mxu0 0
        %650 = vmatpush2.bf16.xpose.msra.mxu0 0
        %651 = vmatprep.mubr.bf16.mxu0 0
        %652 = vmatmul.mubr.bf16.gmra.mxu0 %v614
        %v653 = vpop.f32.mrf.mxu0
        %v654 = vadd.f32 %v558, %v653
        %v655 = vpop.f32.mrf.mxu0
        %v656 = vpop.f32.mrf.mxu0
        %v657 = vpop.f32.mrf.mxu0
        %658 = vdwg.mxu0
        %660 = vrot.lane.b32.xlu0 %v551, 96
        %v661 = vpop.permute.xlu0 %660
        %v663 = vsel %vm563, %v551, 0
        %v666 = vsel %vm563, %v661, 0
        %668 = vmatprep.subr.bf16.mxu0 0
        %669 = vmatpush1.bf16.xpose.msra.mxu0 0
        %670 = vmatprep.subr.bf16.mxu0 0
        %671 = vmatpush1.bf16.xpose.msra.mxu0 0
        %672 = vmatprep.subr.bf16.mxu0 0
        %673 = vmatpush1.bf16.xpose.msra.mxu0 0
        %674 = vmatprep.subr.bf16.mxu0 0
        %675 = vmatpush1.bf16.xpose.msra.mxu0 0
        %676 = vmatprep.subr.bf16.mxu0 0
        %677 = vmatpush1.bf16.xpose.msra.mxu0 0
        %678 = vmatprep.subr.bf16.mxu0 0
        %679 = vmatpush1.bf16.xpose.msra.mxu0 0
        %680 = vmatprep.subr.bf16.mxu0 0
        %681 = vmatpush1.bf16.xpose.msra.mxu0 0
        %682 = vmatprep.subr.bf16.mxu0 0
        %683 = vmatpush1.bf16.xpose.msra.mxu0 %v666
        %684 = vmatprep.subr.bf16.mxu0 0
        %685 = vmatpush2.bf16.xpose.msra.mxu0 0
        %686 = vmatprep.subr.bf16.mxu0 0
        %687 = vmatpush2.bf16.xpose.msra.mxu0 0
        %688 = vmatprep.subr.bf16.mxu0 0
        %689 = vmatpush2.bf16.xpose.msra.mxu0 0
        %690 = vmatprep.subr.bf16.mxu0 0
        %691 = vmatpush2.bf16.xpose.msra.mxu0 0
        %692 = vmatprep.subr.bf16.mxu0 0
        %693 = vmatpush2.bf16.xpose.msra.mxu0 0
        %694 = vmatprep.subr.bf16.mxu0 0
        %695 = vmatpush2.bf16.xpose.msra.mxu0 0
        %696 = vmatprep.subr.bf16.mxu0 0
        %697 = vmatpush2.bf16.xpose.msra.mxu0 0
        %698 = vmatprep.subr.bf16.mxu0 0
        %699 = vmatpush2.bf16.xpose.msra.mxu0 0
        %700 = vmatprep.mubr.bf16.mxu0 0
        %701 = vmatmul.mubr.bf16.gmra.mxu0 %v663
        %v702 = vpop.f32.mrf.mxu0
        %v703 = vadd.f32 %v558, %v702
        %v704 = vpop.f32.mrf.mxu0
        %v705 = vpop.f32.mrf.mxu0
        %v706 = vpop.f32.mrf.mxu0
        %707 = vdwg.mxu0
        %709 = vrot.lane.b32.xlu0 %v552, 96
        %v710 = vpop.permute.xlu0 %709
        %v712 = vsel %vm563, %v552, 0
        %v715 = vsel %vm563, %v710, 0
        %717 = vmatprep.subr.bf16.mxu0 0
        %718 = vmatpush1.bf16.xpose.msra.mxu0 0
        %719 = vmatprep.subr.bf16.mxu0 0
        %720 = vmatpush1.bf16.xpose.msra.mxu0 0
        %721 = vmatprep.subr.bf16.mxu0 0
        %722 = vmatpush1.bf16.xpose.msra.mxu0 0
        %723 = vmatprep.subr.bf16.mxu0 0
        %724 = vmatpush1.bf16.xpose.msra.mxu0 0
        %725 = vmatprep.subr.bf16.mxu0 0
        %726 = vmatpush1.bf16.xpose.msra.mxu0 0
        %727 = vmatprep.subr.bf16.mxu0 0
        %728 = vmatpush1.bf16.xpose.msra.mxu0 0
        %729 = vmatprep.subr.bf16.mxu0 0
        %730 = vmatpush1.bf16.xpose.msra.mxu0 0
        %731 = vmatprep.subr.bf16.mxu0 0
        %732 = vmatpush1.bf16.xpose.msra.mxu0 %v715
        %733 = vmatprep.subr.bf16.mxu0 0
        %734 = vmatpush2.bf16.xpose.msra.mxu0 0
        %735 = vmatprep.subr.bf16.mxu0 0
        %736 = vmatpush2.bf16.xpose.msra.mxu0 0
        %737 = vmatprep.subr.bf16.mxu0 0
        %738 = vmatpush2.bf16.xpose.msra.mxu0 0
        %739 = vmatprep.subr.bf16.mxu0 0
        %740 = vmatpush2.bf16.xpose.msra.mxu0 0
        %741 = vmatprep.subr.bf16.mxu0 0
        %742 = vmatpush2.bf16.xpose.msra.mxu0 0
        %743 = vmatprep.subr.bf16.mxu0 0
        %744 = vmatpush2.bf16.xpose.msra.mxu0 0
        %745 = vmatprep.subr.bf16.mxu0 0
        %746 = vmatpush2.bf16.xpose.msra.mxu0 0
        %747 = vmatprep.subr.bf16.mxu0 0
        %748 = vmatpush2.bf16.xpose.msra.mxu0 0
        %749 = vmatprep.mubr.bf16.mxu0 0
        %750 = vmatmul.mubr.bf16.gmra.mxu0 %v712
        %v751 = vpop.f32.mrf.mxu0
        %v752 = vadd.f32 %v558, %v751
        %v753 = vpop.f32.mrf.mxu0
        %v754 = vpop.f32.mrf.mxu0
        %v755 = vpop.f32.mrf.mxu0
        %756 = vdwg.mxu0
        %v757 = vsel %vm563, %v605, -inf
        %758 = vmax.xlane.f32.xlu0 %v757
        %v759 = vpop.xlane.xlu0 %758
        %v760 = vsel %vm563, %v654, -inf
        %761 = vmax.xlane.f32.xlu0 %v760
        %v762 = vpop.xlane.xlu0 %761
        %v763 = vsel %vm563, %v703, -inf
        %764 = vmax.xlane.f32.xlu0 %v763
        %v765 = vpop.xlane.xlu0 %764
        %v766 = vsel %vm563, %v752, -inf
        %767 = vmax.xlane.f32.xlu0 %v766
        %v768 = vpop.xlane.xlu0 %767
        %v769 = vsub.f32 %v605, %v759
        %v770 = vsub.f32 %v654, %v762
        %v771 = vsub.f32 %v703, %v765
        %v772 = vsub.f32 %v752, %v768
        %v773 = vmul.f32 %v769, 1.442695
        %v774 = vpow.pop %v773
        %v775 = vmul.f32 %v770, 1.442695
        %v776 = vpow.pop %v775
        %v777 = vmul.f32 %v771, 1.442695
        %v778 = vpow.pop %v777
        %v779 = vmul.f32 %v772, 1.442695
        %v780 = vpow.pop %v779
        %v781 = vsel %vm563, %v774, 0.0
        %782 = vadd.xlane.f32.xlu0 %v781
        %v783 = vpop.xlane.xlu0 %782
        %v784 = vsel %vm563, %v776, 0.0
        %785 = vadd.xlane.f32.xlu0 %v784
        %v786 = vpop.xlane.xlu0 %785
        %v787 = vsel %vm563, %v778, 0.0
        %788 = vadd.xlane.f32.xlu0 %v787
        %v789 = vpop.xlane.xlu0 %788
        %v790 = vsel %vm563, %v780, 0.0
        %791 = vadd.xlane.f32.xlu0 %v790
        %v792 = vpop.xlane.xlu0 %791
        %v793 = vrcp.pop %v783
        %v794 = vrcp.pop %v786
        %v795 = vrcp.pop %v789
        %v796 = vrcp.pop %v792
        %v797 = vmul.f32 %v774, %v793
        %v798 = vmul.f32 %v776, %v794
        %v799 = vmul.f32 %v778, %v795
        %v800 = vmul.f32 %v780, %v796
        %v801 = vpack.c.bf16 %v797, %v797
        %v802 = vpack.c.bf16 %v798, %v798
        %v803 = vpack.c.bf16 %v799, %v799
        %v804 = vpack.c.bf16 %v800, %v800
        %805 = vrot.lane.b32.xlu0 %v549, 64
        %v806 = vpop.permute.xlu0 %805
        %v808 = vsel %vm563, %v801, 0
        %vm810 = vcmask 1043456
        %v812 = vsel %vm810, %v806, 0
        %814 = vmatprep.subr.bf16.mxu0 0
        %815 = vmatpush1.bf16.msra.mxu0 0
        %816 = vmatprep.subr.bf16.mxu0 0
        %817 = vmatpush1.bf16.msra.mxu0 0
        %818 = vmatprep.subr.bf16.mxu0 0
        %819 = vmatpush1.bf16.msra.mxu0 0
        %820 = vmatprep.subr.bf16.mxu0 0
        %821 = vmatpush1.bf16.msra.mxu0 0
        %822 = vmatprep.subr.bf16.mxu0 0
        %823 = vmatpush1.bf16.msra.mxu0 0
        %824 = vmatprep.subr.bf16.mxu0 0
        %825 = vmatpush1.bf16.msra.mxu0 0
        %826 = vmatprep.subr.bf16.mxu0 0
        %827 = vmatpush1.bf16.msra.mxu0 0
        %828 = vmatprep.subr.bf16.mxu0 0
        %829 = vmatpush1.bf16.msra.mxu0 %v812
        %830 = vmatprep.subr.bf16.mxu0 0
        %831 = vmatpush2.bf16.msra.mxu0 0
        %832 = vmatprep.subr.bf16.mxu0 0
        %833 = vmatpush2.bf16.msra.mxu0 0
        %834 = vmatprep.subr.bf16.mxu0 0
        %835 = vmatpush2.bf16.msra.mxu0 0
        %836 = vmatprep.subr.bf16.mxu0 0
        %837 = vmatpush2.bf16.msra.mxu0 0
        %838 = vmatprep.subr.bf16.mxu0 0
        %839 = vmatpush2.bf16.msra.mxu0 0
        %840 = vmatprep.subr.bf16.mxu0 0
        %841 = vmatpush2.bf16.msra.mxu0 0
        %842 = vmatprep.subr.bf16.mxu0 0
        %843 = vmatpush2.bf16.msra.mxu0 0
        %844 = vmatprep.subr.bf16.mxu0 0
        %845 = vmatpush2.bf16.msra.mxu0 0
        %846 = vmatprep.mubr.bf16.mxu0 0
        %847 = vmatmul.mubr.bf16.gmra.mxu0 %v808
        %v848 = vpop.f32.mrf.mxu0
        %v849 = vadd.f32 0.0, %v848
        %v850 = vpop.f32.mrf.mxu0
        %v851 = vpop.f32.mrf.mxu0
        %v852 = vpop.f32.mrf.mxu0
        %853 = vdwg.mxu0
        %854 = vrot.lane.b32.xlu0 %v550, 64
        %v855 = vpop.permute.xlu0 %854
        %v857 = vsel %vm563, %v802, 0
        %v860 = vsel %vm810, %v855, 0
        %862 = vmatprep.subr.bf16.mxu0 0
        %863 = vmatpush1.bf16.msra.mxu0 0
        %864 = vmatprep.subr.bf16.mxu0 0
        %865 = vmatpush1.bf16.msra.mxu0 0
        %866 = vmatprep.subr.bf16.mxu0 0
        %867 = vmatpush1.bf16.msra.mxu0 0
        %868 = vmatprep.subr.bf16.mxu0 0
        %869 = vmatpush1.bf16.msra.mxu0 0
        %870 = vmatprep.subr.bf16.mxu0 0
        %871 = vmatpush1.bf16.msra.mxu0 0
        %872 = vmatprep.subr.bf16.mxu0 0
        %873 = vmatpush1.bf16.msra.mxu0 0
        %874 = vmatprep.subr.bf16.mxu0 0
        %875 = vmatpush1.bf16.msra.mxu0 0
        %876 = vmatprep.subr.bf16.mxu0 0
        %877 = vmatpush1.bf16.msra.mxu0 %v860
        %878 = vmatprep.subr.bf16.mxu0 0
        %879 = vmatpush2.bf16.msra.mxu0 0
        %880 = vmatprep.subr.bf16.mxu0 0
        %881 = vmatpush2.bf16.msra.mxu0 0
        %882 = vmatprep.subr.bf16.mxu0 0
        %883 = vmatpush2.bf16.msra.mxu0 0
        %884 = vmatprep.subr.bf16.mxu0 0
        %885 = vmatpush2.bf16.msra.mxu0 0
        %886 = vmatprep.subr.bf16.mxu0 0
        %887 = vmatpush2.bf16.msra.mxu0 0
        %888 = vmatprep.subr.bf16.mxu0 0
        %889 = vmatpush2.bf16.msra.mxu0 0
        %890 = vmatprep.subr.bf16.mxu0 0
        %891 = vmatpush2.bf16.msra.mxu0 0
        %892 = vmatprep.subr.bf16.mxu0 0
        %893 = vmatpush2.bf16.msra.mxu0 0
        %894 = vmatprep.mubr.bf16.mxu0 0
        %895 = vmatmul.mubr.bf16.gmra.mxu0 %v857
        %v896 = vpop.f32.mrf.mxu0
        %v897 = vadd.f32 0.0, %v896
        %v898 = vpop.f32.mrf.mxu0
        %v899 = vpop.f32.mrf.mxu0
        %v900 = vpop.f32.mrf.mxu0
        %901 = vdwg.mxu0
        %902 = vrot.lane.b32.xlu0 %v551, 64
        %v903 = vpop.permute.xlu0 %902
        %v905 = vsel %vm563, %v803, 0
        %v908 = vsel %vm810, %v903, 0
        %910 = vmatprep.subr.bf16.mxu0 0
        %911 = vmatpush1.bf16.msra.mxu0 0
        %912 = vmatprep.subr.bf16.mxu0 0
        %913 = vmatpush1.bf16.msra.mxu0 0
        %914 = vmatprep.subr.bf16.mxu0 0
        %915 = vmatpush1.bf16.msra.mxu0 0
        %916 = vmatprep.subr.bf16.mxu0 0
        %917 = vmatpush1.bf16.msra.mxu0 0
        %918 = vmatprep.subr.bf16.mxu0 0
        %919 = vmatpush1.bf16.msra.mxu0 0
        %920 = vmatprep.subr.bf16.mxu0 0
        %921 = vmatpush1.bf16.msra.mxu0 0
        %922 = vmatprep.subr.bf16.mxu0 0
        %923 = vmatpush1.bf16.msra.mxu0 0
        %924 = vmatprep.subr.bf16.mxu0 0
        %925 = vmatpush1.bf16.msra.mxu0 %v908
        %926 = vmatprep.subr.bf16.mxu0 0
        %927 = vmatpush2.bf16.msra.mxu0 0
        %928 = vmatprep.subr.bf16.mxu0 0
        %929 = vmatpush2.bf16.msra.mxu0 0
        %930 = vmatprep.subr.bf16.mxu0 0
        %931 = vmatpush2.bf16.msra.mxu0 0
        %932 = vmatprep.subr.bf16.mxu0 0
        %933 = vmatpush2.bf16.msra.mxu0 0
        %934 = vmatprep.subr.bf16.mxu0 0
        %935 = vmatpush2.bf16.msra.mxu0 0
        %936 = vmatprep.subr.bf16.mxu0 0
        %937 = vmatpush2.bf16.msra.mxu0 0
        %938 = vmatprep.subr.bf16.mxu0 0
        %939 = vmatpush2.bf16.msra.mxu0 0
        %940 = vmatprep.subr.bf16.mxu0 0
        %941 = vmatpush2.bf16.msra.mxu0 0
        %942 = vmatprep.mubr.bf16.mxu0 0
        %943 = vmatmul.mubr.bf16.gmra.mxu0 %v905
        %v944 = vpop.f32.mrf.mxu0
        %v945 = vadd.f32 0.0, %v944
        %v946 = vpop.f32.mrf.mxu0
        %v947 = vpop.f32.mrf.mxu0
        %v948 = vpop.f32.mrf.mxu0
        %949 = vdwg.mxu0
        %950 = vrot.lane.b32.xlu0 %v552, 64
        %v951 = vpop.permute.xlu0 %950
        %v953 = vsel %vm563, %v804, 0
        %v956 = vsel %vm810, %v951, 0
        %958 = vmatprep.subr.bf16.mxu0 0
        %959 = vmatpush1.bf16.msra.mxu0 0
        %960 = vmatprep.subr.bf16.mxu0 0
        %961 = vmatpush1.bf16.msra.mxu0 0
        %962 = vmatprep.subr.bf16.mxu0 0
        %963 = vmatpush1.bf16.msra.mxu0 0
        %964 = vmatprep.subr.bf16.mxu0 0
        %965 = vmatpush1.bf16.msra.mxu0 0
        %966 = vmatprep.subr.bf16.mxu0 0
        %967 = vmatpush1.bf16.msra.mxu0 0
        %968 = vmatprep.subr.bf16.mxu0 0
        %969 = vmatpush1.bf16.msra.mxu0 0
        %970 = vmatprep.subr.bf16.mxu0 0
        %971 = vmatpush1.bf16.msra.mxu0 0
        %972 = vmatprep.subr.bf16.mxu0 0
        %973 = vmatpush1.bf16.msra.mxu0 %v956
        %974 = vmatprep.subr.bf16.mxu0 0
        %975 = vmatpush2.bf16.msra.mxu0 0
        %976 = vmatprep.subr.bf16.mxu0 0
        %977 = vmatpush2.bf16.msra.mxu0 0
        %978 = vmatprep.subr.bf16.mxu0 0
        %979 = vmatpush2.bf16.msra.mxu0 0
        %980 = vmatprep.subr.bf16.mxu0 0
        %981 = vmatpush2.bf16.msra.mxu0 0
        %982 = vmatprep.subr.bf16.mxu0 0
        %983 = vmatpush2.bf16.msra.mxu0 0
        %984 = vmatprep.subr.bf16.mxu0 0
        %985 = vmatpush2.bf16.msra.mxu0 0
        %986 = vmatprep.subr.bf16.mxu0 0
        %987 = vmatpush2.bf16.msra.mxu0 0
        %988 = vmatprep.subr.bf16.mxu0 0
        %989 = vmatpush2.bf16.msra.mxu0 0
        %990 = vmatprep.mubr.bf16.mxu0 0
        %991 = vmatmul.mubr.bf16.gmra.mxu0 %v953
        %v992 = vpop.f32.mrf.mxu0
        %v993 = vadd.f32 0.0, %v992
        %v994 = vpop.f32.mrf.mxu0
        %v995 = vpop.f32.mrf.mxu0
        %v996 = vpop.f32.mrf.mxu0
        %997 = vdwg.mxu0
        %999 = vrot.lane.b32.xlu0 %v897, 8
        %v1000 = vpop.permute.xlu0 %999
        %1003 = vrot.lane.b32.xlu0 %v945, 16
        %v1004 = vpop.permute.xlu0 %1003
        %1007 = vrot.lane.b32.xlu0 %v993, 24
        %v1008 = vpop.permute.xlu0 %1007
        %v1010 = vsel %vm563, %v849, %v1000
        %vm1011 = vcmask 130048
        %v1012 = vsel %vm1011, %v1010, %v1004
        %vm1013 = vcmask 195584
        %v1014 = vsel %vm1013, %v1012, %v1008
        %1016 = vrot.lane.b32.xlu0 %v534, 120
        %v1017 = vpop.permute.xlu0 %1016
        %1019 = vrot.lane.b32.xlu0 %v534, 112
        %v1020 = vpop.permute.xlu0 %1019
        %1022 = vrot.lane.b32.xlu0 %v534, 104
        %v1023 = vpop.permute.xlu0 %1022
        %v1025 = vpack.c.bf16 %v534, %v534
        %v1026 = vpack.c.bf16 %v1017, %v1017
        %v1027 = vpack.c.bf16 %v1020, %v1020
        %v1028 = vpack.c.bf16 %v1023, %v1023
        %v1029 = vmul.f32 %v538, -1e+09
        %v1031 = vlaneseq
        %v1032 = vshrl.u32 %v1031, 7
        %v1033 = vsub.s32 0, %v1032
        %v1034 = vrot.slane %v1029, %v1033
        %1037 = vrot.lane.b32.xlu0 %v1025, 96
        %v1038 = vpop.permute.xlu0 %1037
        %v1040 = vsel %vm563, %v1025, 0
        %v1043 = vsel %vm563, %v1038, 0
        %1045 = vmatprep.subr.bf16.mxu0 0
        %1046 = vmatpush1.bf16.xpose.msra.mxu0 0
        %1047 = vmatprep.subr.bf16.mxu0 0
        %1048 = vmatpush1.bf16.xpose.msra.mxu0 0
        %1049 = vmatprep.subr.bf16.mxu0 0
        %1050 = vmatpush1.bf16.xpose.msra.mxu0 0
        %1051 = vmatprep.subr.bf16.mxu0 0
        %1052 = vmatpush1.bf16.xpose.msra.mxu0 0
        %1053 = vmatprep.subr.bf16.mxu0 0
        %1054 = vmatpush1.bf16.xpose.msra.mxu0 0
        %1055 = vmatprep.subr.bf16.mxu0 0
        %1056 = vmatpush1.bf16.xpose.msra.mxu0 0
        %1057 = vmatprep.subr.bf16.mxu0 0
        %1058 = vmatpush1.bf16.xpose.msra.mxu0 0
        %1059 = vmatprep.subr.bf16.mxu0 0
        %1060 = vmatpush1.bf16.xpose.msra.mxu0 %v1043
        %1061 = vmatprep.subr.bf16.mxu0 0
        %1062 = vmatpush2.bf16.xpose.msra.mxu0 0
        %1063 = vmatprep.subr.bf16.mxu0 0
        %1064 = vmatpush2.bf16.xpose.msra.mxu0 0
        %1065 = vmatprep.subr.bf16.mxu0 0
        %1066 = vmatpush2.bf16.xpose.msra.mxu0 0
        %1067 = vmatprep.subr.bf16.mxu0 0
        %1068 = vmatpush2.bf16.xpose.msra.mxu0 0
        %1069 = vmatprep.subr.bf16.mxu0 0
        %1070 = vmatpush2.bf16.xpose.msra.mxu0 0
        %1071 = vmatprep.subr.bf16.mxu0 0
        %1072 = vmatpush2.bf16.xpose.msra.mxu0 0
        %1073 = vmatprep.subr.bf16.mxu0 0
        %1074 = vmatpush2.bf16.xpose.msra.mxu0 0
        %1075 = vmatprep.subr.bf16.mxu0 0
        %1076 = vmatpush2.bf16.xpose.msra.mxu0 0
        %1077 = vmatprep.mubr.bf16.mxu0 0
        %1078 = vmatmul.mubr.bf16.gmra.mxu0 %v1040
        %v1079 = vpop.f32.mrf.mxu0
        %v1080 = vadd.f32 %v1034, %v1079
        %v1081 = vpop.f32.mrf.mxu0
        %v1082 = vpop.f32.mrf.mxu0
        %v1083 = vpop.f32.mrf.mxu0
        %1084 = vdwg.mxu0
        %1086 = vrot.lane.b32.xlu0 %v1026, 96
        %v1087 = vpop.permute.xlu0 %1086
        %v1089 = vsel %vm563, %v1026, 0
        %v1092 = vsel %vm563, %v1087, 0
        %1094 = vmatprep.subr.bf16.mxu0 0
        %1095 = vmatpush1.bf16.xpose.msra.mxu0 0
        %1096 = vmatprep.subr.bf16.mxu0 0
        %1097 = vmatpush1.bf16.xpose.msra.mxu0 0
        %1098 = vmatprep.subr.bf16.mxu0 0
        %1099 = vmatpush1.bf16.xpose.msra.mxu0 0
        %1100 = vmatprep.subr.bf16.mxu0 0
        %1101 = vmatpush1.bf16.xpose.msra.mxu0 0
        %1102 = vmatprep.subr.bf16.mxu0 0
        %1103 = vmatpush1.bf16.xpose.msra.mxu0 0
        %1104 = vmatprep.subr.bf16.mxu0 0
        %1105 = vmatpush1.bf16.xpose.msra.mxu0 0
        %1106 = vmatprep.subr.bf16.mxu0 0
        %1107 = vmatpush1.bf16.xpose.msra.mxu0 0
        %1108 = vmatprep.subr.bf16.mxu0 0
        %1109 = vmatpush1.bf16.xpose.msra.mxu0 %v1092
        %1110 = vmatprep.subr.bf16.mxu0 0
        %1111 = vmatpush2.bf16.xpose.msra.mxu0 0
        %1112 = vmatprep.subr.bf16.mxu0 0
        %1113 = vmatpush2.bf16.xpose.msra.mxu0 0
        %1114 = vmatprep.subr.bf16.mxu0 0
        %1115 = vmatpush2.bf16.xpose.msra.mxu0 0
        %1116 = vmatprep.subr.bf16.mxu0 0
        %1117 = vmatpush2.bf16.xpose.msra.mxu0 0
        %1118 = vmatprep.subr.bf16.mxu0 0
        %1119 = vmatpush2.bf16.xpose.msra.mxu0 0
        %1120 = vmatprep.subr.bf16.mxu0 0
        %1121 = vmatpush2.bf16.xpose.msra.mxu0 0
        %1122 = vmatprep.subr.bf16.mxu0 0
        %1123 = vmatpush2.bf16.xpose.msra.mxu0 0
        %1124 = vmatprep.subr.bf16.mxu0 0
        %1125 = vmatpush2.bf16.xpose.msra.mxu0 0
        %1126 = vmatprep.mubr.bf16.mxu0 0
        %1127 = vmatmul.mubr.bf16.gmra.mxu0 %v1089
        %v1128 = vpop.f32.mrf.mxu0
        %v1129 = vadd.f32 %v1034, %v1128
        %v1130 = vpop.f32.mrf.mxu0
        %v1131 = vpop.f32.mrf.mxu0
        %v1132 = vpop.f32.mrf.mxu0
        %1133 = vdwg.mxu0
        %1135 = vrot.lane.b32.xlu0 %v1027, 96
        %v1136 = vpop.permute.xlu0 %1135
        %v1138 = vsel %vm563, %v1027, 0
        %v1141 = vsel %vm563, %v1136, 0
        %1143 = vmatprep.subr.bf16.mxu0 0
        %1144 = vmatpush1.bf16.xpose.msra.mxu0 0
        %1145 = vmatprep.subr.bf16.mxu0 0
        %1146 = vmatpush1.bf16.xpose.msra.mxu0 0
        %1147 = vmatprep.subr.bf16.mxu0 0
        %1148 = vmatpush1.bf16.xpose.msra.mxu0 0
        %1149 = vmatprep.subr.bf16.mxu0 0
        %1150 = vmatpush1.bf16.xpose.msra.mxu0 0
        %1151 = vmatprep.subr.bf16.mxu0 0
        %1152 = vmatpush1.bf16.xpose.msra.mxu0 0
        %1153 = vmatprep.subr.bf16.mxu0 0
        %1154 = vmatpush1.bf16.xpose.msra.mxu0 0
        %1155 = vmatprep.subr.bf16.mxu0 0
        %1156 = vmatpush1.bf16.xpose.msra.mxu0 0
        %1157 = vmatprep.subr.bf16.mxu0 0
        %1158 = vmatpush1.bf16.xpose.msra.mxu0 %v1141
        %1159 = vmatprep.subr.bf16.mxu0 0
        %1160 = vmatpush2.bf16.xpose.msra.mxu0 0
        %1161 = vmatprep.subr.bf16.mxu0 0
        %1162 = vmatpush2.bf16.xpose.msra.mxu0 0
        %1163 = vmatprep.subr.bf16.mxu0 0
        %1164 = vmatpush2.bf16.xpose.msra.mxu0 0
        %1165 = vmatprep.subr.bf16.mxu0 0
        %1166 = vmatpush2.bf16.xpose.msra.mxu0 0
        %1167 = vmatprep.subr.bf16.mxu0 0
        %1168 = vmatpush2.bf16.xpose.msra.mxu0 0
        %1169 = vmatprep.subr.bf16.mxu0 0
        %1170 = vmatpush2.bf16.xpose.msra.mxu0 0
        %1171 = vmatprep.subr.bf16.mxu0 0
        %1172 = vmatpush2.bf16.xpose.msra.mxu0 0
        %1173 = vmatprep.subr.bf16.mxu0 0
        %1174 = vmatpush2.bf16.xpose.msra.mxu0 0
        %1175 = vmatprep.mubr.bf16.mxu0 0
        %1176 = vmatmul.mubr.bf16.gmra.mxu0 %v1138
        %v1177 = vpop.f32.mrf.mxu0
        %v1178 = vadd.f32 %v1034, %v1177
        %v1179 = vpop.f32.mrf.mxu0
        %v1180 = vpop.f32.mrf.mxu0
        %v1181 = vpop.f32.mrf.mxu0
        %1182 = vdwg.mxu0
        %1184 = vrot.lane.b32.xlu0 %v1028, 96
        %v1185 = vpop.permute.xlu0 %1184
        %v1187 = vsel %vm563, %v1028, 0
        %v1190 = vsel %vm563, %v1185, 0
        %1192 = vmatprep.subr.bf16.mxu0 0
        %1193 = vmatpush1.bf16.xpose.msra.mxu0 0
        %1194 = vmatprep.subr.bf16.mxu0 0
        %1195 = vmatpush1.bf16.xpose.msra.mxu0 0
        %1196 = vmatprep.subr.bf16.mxu0 0
        %1197 = vmatpush1.bf16.xpose.msra.mxu0 0
        %1198 = vmatprep.subr.bf16.mxu0 0
        %1199 = vmatpush1.bf16.xpose.msra.mxu0 0
        %1200 = vmatprep.subr.bf16.mxu0 0
        %1201 = vmatpush1.bf16.xpose.msra.mxu0 0
        %1202 = vmatprep.subr.bf16.mxu0 0
        %1203 = vmatpush1.bf16.xpose.msra.mxu0 0
        %1204 = vmatprep.subr.bf16.mxu0 0
        %1205 = vmatpush1.bf16.xpose.msra.mxu0 0
        %1206 = vmatprep.subr.bf16.mxu0 0
        %1207 = vmatpush1.bf16.xpose.msra.mxu0 %v1190
        %1208 = vmatprep.subr.bf16.mxu0 0
        %1209 = vmatpush2.bf16.xpose.msra.mxu0 0
        %1210 = vmatprep.subr.bf16.mxu0 0
        %1211 = vmatpush2.bf16.xpose.msra.mxu0 0
        %1212 = vmatprep.subr.bf16.mxu0 0
        %1213 = vmatpush2.bf16.xpose.msra.mxu0 0
        %1214 = vmatprep.subr.bf16.mxu0 0
        %1215 = vmatpush2.bf16.xpose.msra.mxu0 0
        %1216 = vmatprep.subr.bf16.mxu0 0
        %1217 = vmatpush2.bf16.xpose.msra.mxu0 0
        %1218 = vmatprep.subr.bf16.mxu0 0
        %1219 = vmatpush2.bf16.xpose.msra.mxu0 0
        %1220 = vmatprep.subr.bf16.mxu0 0
        %1221 = vmatpush2.bf16.xpose.msra.mxu0 0
        %1222 = vmatprep.subr.bf16.mxu0 0
        %1223 = vmatpush2.bf16.xpose.msra.mxu0 0
        %1224 = vmatprep.mubr.bf16.mxu0 0
        %1225 = vmatmul.mubr.bf16.gmra.mxu0 %v1187
        %v1226 = vpop.f32.mrf.mxu0
        %v1227 = vadd.f32 %v1034, %v1226
        %v1228 = vpop.f32.mrf.mxu0
        %v1229 = vpop.f32.mrf.mxu0
        %v1230 = vpop.f32.mrf.mxu0
        %1231 = vdwg.mxu0
        %v1232 = vsel %vm563, %v1080, -inf
        %1233 = vmax.xlane.f32.xlu0 %v1232
        %v1234 = vpop.xlane.xlu0 %1233
        %v1235 = vsel %vm563, %v1129, -inf
        %1236 = vmax.xlane.f32.xlu0 %v1235
        %v1237 = vpop.xlane.xlu0 %1236
        %v1238 = vsel %vm563, %v1178, -inf
        %1239 = vmax.xlane.f32.xlu0 %v1238
        %v1240 = vpop.xlane.xlu0 %1239
        %v1241 = vsel %vm563, %v1227, -inf
        %1242 = vmax.xlane.f32.xlu0 %v1241
        %v1243 = vpop.xlane.xlu0 %1242
        %v1244 = vsub.f32 %v1080, %v1234
        %v1245 = vsub.f32 %v1129, %v1237
        %v1246 = vsub.f32 %v1178, %v1240
        %v1247 = vsub.f32 %v1227, %v1243
        %v1248 = vmul.f32 %v1244, 1.442695
        %v1249 = vpow.pop %v1248
        %v1250 = vmul.f32 %v1245, 1.442695
        %v1251 = vpow.pop %v1250
        %v1252 = vmul.f32 %v1246, 1.442695
        %v1253 = vpow.pop %v1252
        %v1254 = vmul.f32 %v1247, 1.442695
        %v1255 = vpow.pop %v1254
        %v1256 = vsel %vm563, %v1249, 0.0
        %1257 = vadd.xlane.f32.xlu0 %v1256
        %v1258 = vpop.xlane.xlu0 %1257
        %v1259 = vsel %vm563, %v1251, 0.0
        %1260 = vadd.xlane.f32.xlu0 %v1259
        %v1261 = vpop.xlane.xlu0 %1260
        %v1262 = vsel %vm563, %v1253, 0.0
        %1263 = vadd.xlane.f32.xlu0 %v1262
        %v1264 = vpop.xlane.xlu0 %1263
        %v1265 = vsel %vm563, %v1255, 0.0
        %1266 = vadd.xlane.f32.xlu0 %v1265
        %v1267 = vpop.xlane.xlu0 %1266
        %v1268 = vrcp.pop %v1258
        %v1269 = vrcp.pop %v1261
        %v1270 = vrcp.pop %v1264
        %v1271 = vrcp.pop %v1267
        %v1272 = vmul.f32 %v1249, %v1268
        %v1273 = vmul.f32 %v1251, %v1269
        %v1274 = vmul.f32 %v1253, %v1270
        %v1275 = vmul.f32 %v1255, %v1271
        %v1276 = vpack.c.bf16 %v1272, %v1272
        %v1277 = vpack.c.bf16 %v1273, %v1273
        %v1278 = vpack.c.bf16 %v1274, %v1274
        %v1279 = vpack.c.bf16 %v1275, %v1275
        %1280 = vrot.lane.b32.xlu0 %v1025, 64
        %v1281 = vpop.permute.xlu0 %1280
        %v1283 = vsel %vm563, %v1276, 0
        %v1286 = vsel %vm810, %v1281, 0
        %1288 = vmatprep.subr.bf16.mxu0 0
        %1289 = vmatpush1.bf16.msra.mxu0 0
        %1290 = vmatprep.subr.bf16.mxu0 0
        %1291 = vmatpush1.bf16.msra.mxu0 0
        %1292 = vmatprep.subr.bf16.mxu0 0
        %1293 = vmatpush1.bf16.msra.mxu0 0
        %1294 = vmatprep.subr.bf16.mxu0 0
        %1295 = vmatpush1.bf16.msra.mxu0 0
        %1296 = vmatprep.subr.bf16.mxu0 0
        %1297 = vmatpush1.bf16.msra.mxu0 0
        %1298 = vmatprep.subr.bf16.mxu0 0
        %1299 = vmatpush1.bf16.msra.mxu0 0
        %1300 = vmatprep.subr.bf16.mxu0 0
        %1301 = vmatpush1.bf16.msra.mxu0 0
        %1302 = vmatprep.subr.bf16.mxu0 0
        %1303 = vmatpush1.bf16.msra.mxu0 %v1286
        %1304 = vmatprep.subr.bf16.mxu0 0
        %1305 = vmatpush2.bf16.msra.mxu0 0
        %1306 = vmatprep.subr.bf16.mxu0 0
        %1307 = vmatpush2.bf16.msra.mxu0 0
        %1308 = vmatprep.subr.bf16.mxu0 0
        %1309 = vmatpush2.bf16.msra.mxu0 0
        %1310 = vmatprep.subr.bf16.mxu0 0
        %1311 = vmatpush2.bf16.msra.mxu0 0
        %1312 = vmatprep.subr.bf16.mxu0 0
        %1313 = vmatpush2.bf16.msra.mxu0 0
        %1314 = vmatprep.subr.bf16.mxu0 0
        %1315 = vmatpush2.bf16.msra.mxu0 0
        %1316 = vmatprep.subr.bf16.mxu0 0
        %1317 = vmatpush2.bf16.msra.mxu0 0
        %1318 = vmatprep.subr.bf16.mxu0 0
        %1319 = vmatpush2.bf16.msra.mxu0 0
        %1320 = vmatprep.mubr.bf16.mxu0 0
        %1321 = vmatmul.mubr.bf16.gmra.mxu0 %v1283
        %v1322 = vpop.f32.mrf.mxu0
        %v1323 = vadd.f32 0.0, %v1322
        %v1324 = vpop.f32.mrf.mxu0
        %v1325 = vpop.f32.mrf.mxu0
        %v1326 = vpop.f32.mrf.mxu0
        %1327 = vdwg.mxu0
        %1328 = vrot.lane.b32.xlu0 %v1026, 64
        %v1329 = vpop.permute.xlu0 %1328
        %v1331 = vsel %vm563, %v1277, 0
        %v1334 = vsel %vm810, %v1329, 0
        %1336 = vmatprep.subr.bf16.mxu0 0
        %1337 = vmatpush1.bf16.msra.mxu0 0
        %1338 = vmatprep.subr.bf16.mxu0 0
        %1339 = vmatpush1.bf16.msra.mxu0 0
        %1340 = vmatprep.subr.bf16.mxu0 0
        %1341 = vmatpush1.bf16.msra.mxu0 0
        %1342 = vmatprep.subr.bf16.mxu0 0
        %1343 = vmatpush1.bf16.msra.mxu0 0
        %1344 = vmatprep.subr.bf16.mxu0 0
        %1345 = vmatpush1.bf16.msra.mxu0 0
        %1346 = vmatprep.subr.bf16.mxu0 0
        %1347 = vmatpush1.bf16.msra.mxu0 0
        %1348 = vmatprep.subr.bf16.mxu0 0
        %1349 = vmatpush1.bf16.msra.mxu0 0
        %1350 = vmatprep.subr.bf16.mxu0 0
        %1351 = vmatpush1.bf16.msra.mxu0 %v1334
        %1352 = vmatprep.subr.bf16.mxu0 0
        %1353 = vmatpush2.bf16.msra.mxu0 0
        %1354 = vmatprep.subr.bf16.mxu0 0
        %1355 = vmatpush2.bf16.msra.mxu0 0
        %1356 = vmatprep.subr.bf16.mxu0 0
        %1357 = vmatpush2.bf16.msra.mxu0 0
        %1358 = vmatprep.subr.bf16.mxu0 0
        %1359 = vmatpush2.bf16.msra.mxu0 0
        %1360 = vmatprep.subr.bf16.mxu0 0
        %1361 = vmatpush2.bf16.msra.mxu0 0
        %1362 = vmatprep.subr.bf16.mxu0 0
        %1363 = vmatpush2.bf16.msra.mxu0 0
        %1364 = vmatprep.subr.bf16.mxu0 0
        %1365 = vmatpush2.bf16.msra.mxu0 0
        %1366 = vmatprep.subr.bf16.mxu0 0
        %1367 = vmatpush2.bf16.msra.mxu0 0
        %1368 = vmatprep.mubr.bf16.mxu0 0
        %1369 = vmatmul.mubr.bf16.gmra.mxu0 %v1331
        %v1370 = vpop.f32.mrf.mxu0
        %v1371 = vadd.f32 0.0, %v1370
        %v1372 = vpop.f32.mrf.mxu0
        %v1373 = vpop.f32.mrf.mxu0
        %v1374 = vpop.f32.mrf.mxu0
        %1375 = vdwg.mxu0
        %1376 = vrot.lane.b32.xlu0 %v1027, 64
        %v1377 = vpop.permute.xlu0 %1376
        %v1379 = vsel %vm563, %v1278, 0
        %v1382 = vsel %vm810, %v1377, 0
        %1384 = vmatprep.subr.bf16.mxu0 0
        %1385 = vmatpush1.bf16.msra.mxu0 0
        %1386 = vmatprep.subr.bf16.mxu0 0
        %1387 = vmatpush1.bf16.msra.mxu0 0
        %1388 = vmatprep.subr.bf16.mxu0 0
        %1389 = vmatpush1.bf16.msra.mxu0 0
        %1390 = vmatprep.subr.bf16.mxu0 0
        %1391 = vmatpush1.bf16.msra.mxu0 0
        %1392 = vmatprep.subr.bf16.mxu0 0
        %1393 = vmatpush1.bf16.msra.mxu0 0
        %1394 = vmatprep.subr.bf16.mxu0 0
        %1395 = vmatpush1.bf16.msra.mxu0 0
        %1396 = vmatprep.subr.bf16.mxu0 0
        %1397 = vmatpush1.bf16.msra.mxu0 0
        %1398 = vmatprep.subr.bf16.mxu0 0
        %1399 = vmatpush1.bf16.msra.mxu0 %v1382
        %1400 = vmatprep.subr.bf16.mxu0 0
        %1401 = vmatpush2.bf16.msra.mxu0 0
        %1402 = vmatprep.subr.bf16.mxu0 0
        %1403 = vmatpush2.bf16.msra.mxu0 0
        %1404 = vmatprep.subr.bf16.mxu0 0
        %1405 = vmatpush2.bf16.msra.mxu0 0
        %1406 = vmatprep.subr.bf16.mxu0 0
        %1407 = vmatpush2.bf16.msra.mxu0 0
        %1408 = vmatprep.subr.bf16.mxu0 0
        %1409 = vmatpush2.bf16.msra.mxu0 0
        %1410 = vmatprep.subr.bf16.mxu0 0
        %1411 = vmatpush2.bf16.msra.mxu0 0
        %1412 = vmatprep.subr.bf16.mxu0 0
        %1413 = vmatpush2.bf16.msra.mxu0 0
        %1414 = vmatprep.subr.bf16.mxu0 0
        %1415 = vmatpush2.bf16.msra.mxu0 0
        %1416 = vmatprep.mubr.bf16.mxu0 0
        %1417 = vmatmul.mubr.bf16.gmra.mxu0 %v1379
        %v1418 = vpop.f32.mrf.mxu0
        %v1419 = vadd.f32 0.0, %v1418
        %v1420 = vpop.f32.mrf.mxu0
        %v1421 = vpop.f32.mrf.mxu0
        %v1422 = vpop.f32.mrf.mxu0
        %1423 = vdwg.mxu0
        %1424 = vrot.lane.b32.xlu0 %v1028, 64
        %v1425 = vpop.permute.xlu0 %1424
        %v1427 = vsel %vm563, %v1279, 0
        %v1430 = vsel %vm810, %v1425, 0
        %1432 = vmatprep.subr.bf16.mxu0 0
        %1433 = vmatpush1.bf16.msra.mxu0 0
        %1434 = vmatprep.subr.bf16.mxu0 0
        %1435 = vmatpush1.bf16.msra.mxu0 0
        %1436 = vmatprep.subr.bf16.mxu0 0
        %1437 = vmatpush1.bf16.msra.mxu0 0
        %1438 = vmatprep.subr.bf16.mxu0 0
        %1439 = vmatpush1.bf16.msra.mxu0 0
        %1440 = vmatprep.subr.bf16.mxu0 0
        %1441 = vmatpush1.bf16.msra.mxu0 0
        %1442 = vmatprep.subr.bf16.mxu0 0
        %1443 = vmatpush1.bf16.msra.mxu0 0
        %1444 = vmatprep.subr.bf16.mxu0 0
        %1445 = vmatpush1.bf16.msra.mxu0 0
        %1446 = vmatprep.subr.bf16.mxu0 0
        %1447 = vmatpush1.bf16.msra.mxu0 %v1430
        %1448 = vmatprep.subr.bf16.mxu0 0
        %1449 = vmatpush2.bf16.msra.mxu0 0
        %1450 = vmatprep.subr.bf16.mxu0 0
        %1451 = vmatpush2.bf16.msra.mxu0 0
        %1452 = vmatprep.subr.bf16.mxu0 0
        %1453 = vmatpush2.bf16.msra.mxu0 0
        %1454 = vmatprep.subr.bf16.mxu0 0
        %1455 = vmatpush2.bf16.msra.mxu0 0
        %1456 = vmatprep.subr.bf16.mxu0 0
        %1457 = vmatpush2.bf16.msra.mxu0 0
        %1458 = vmatprep.subr.bf16.mxu0 0
        %1459 = vmatpush2.bf16.msra.mxu0 0
        %1460 = vmatprep.subr.bf16.mxu0 0
        %1461 = vmatpush2.bf16.msra.mxu0 0
        %1462 = vmatprep.subr.bf16.mxu0 0
        %1463 = vmatpush2.bf16.msra.mxu0 0
        %1464 = vmatprep.mubr.bf16.mxu0 0
        %1465 = vmatmul.mubr.bf16.gmra.mxu0 %v1427
        %v1466 = vpop.f32.mrf.mxu0
        %v1467 = vadd.f32 0.0, %v1466
        %v1468 = vpop.f32.mrf.mxu0
        %v1469 = vpop.f32.mrf.mxu0
        %v1470 = vpop.f32.mrf.mxu0
        %1471 = vdwg.mxu0
        %1473 = vrot.lane.b32.xlu0 %v1371, 8
        %v1474 = vpop.permute.xlu0 %1473
        %1477 = vrot.lane.b32.xlu0 %v1419, 16
        %v1478 = vpop.permute.xlu0 %1477
        %1481 = vrot.lane.b32.xlu0 %v1467, 24
        %v1482 = vpop.permute.xlu0 %1481
        %v1484 = vsel %vm563, %v1323, %v1474
        %v1485 = vsel %vm1011, %v1484, %v1478
        %v1486 = vsel %vm1013, %v1485, %v1482
        %v1487 = vpack.c.bf16 %v1486, %v1014
        %v1488 = vld [vmem:[%s425] sm:$0xf]
        %v1489 = vld [vmem:[%s425 + $0x4] sm:$0xf]
        %v1490 = vld [vmem:[%s425 + $0x8] sm:$0xf]
        %v1491 = vld [vmem:[%s425 + $0xc] sm:$0xf]
        %v1492 = vlaneseq
        %v1493 = vshrl.u32 %v1492, 7
        %v1494 = vsub.s32 3, %v1493
        %v1495 = vrot.slane %v458, %v1494
        %v1500 = vunpack.c.l.b16 %v1488
        %v1501 = vunpack.c.l.b16 %v1489
        %v1502 = vunpack.c.l.b16 %v1490
        %v1503 = vunpack.c.l.b16 %v1491
        %v1504 = vpack.c.b16 %v1501, %v1500
        %v1505 = vpack.c.b16 %v1503, %v1502
        %v1509 = vsel %vm469, %v1487, 0
        %1511 = vmatprep.subr.bf16.mxu0 0
        %1512 = vmatpush1.bf16.msra.mxu0 0
        %1513 = vmatprep.subr.bf16.mxu0 0
        %1514 = vmatpush1.bf16.msra.mxu0 0
        %1515 = vmatprep.subr.bf16.mxu0 0
        %1516 = vmatpush1.bf16.msra.mxu0 0
        %1517 = vmatprep.subr.bf16.mxu0 0
        %1518 = vmatpush1.bf16.msra.mxu0 0
        %1519 = vmatprep.subr.bf16.mxu0 0
        %1520 = vmatpush1.bf16.msra.mxu0 0
        %1521 = vmatprep.subr.bf16.mxu0 0
        %1522 = vmatpush1.bf16.msra.mxu0 0
        %1523 = vmatprep.subr.bf16.mxu0 0
        %1524 = vmatpush1.bf16.msra.mxu0 %v1505
        %1525 = vmatprep.subr.bf16.mxu0 0
        %1526 = vmatpush1.bf16.msra.mxu0 %v1504
        %1527 = vmatprep.subr.bf16.mxu0 0
        %1528 = vmatpush2.bf16.msra.mxu0 0
        %1529 = vmatprep.subr.bf16.mxu0 0
        %1530 = vmatpush2.bf16.msra.mxu0 0
        %1531 = vmatprep.subr.bf16.mxu0 0
        %1532 = vmatpush2.bf16.msra.mxu0 0
        %1533 = vmatprep.subr.bf16.mxu0 0
        %1534 = vmatpush2.bf16.msra.mxu0 0
        %1535 = vmatprep.subr.bf16.mxu0 0
        %1536 = vmatpush2.bf16.msra.mxu0 0
        %1537 = vmatprep.subr.bf16.mxu0 0
        %1538 = vmatpush2.bf16.msra.mxu0 0
        %1539 = vmatprep.subr.bf16.mxu0 0
        %1540 = vmatpush2.bf16.msra.mxu0 0
        %1541 = vmatprep.subr.bf16.mxu0 0
        %1542 = vmatpush2.bf16.msra.mxu0 0
        %1543 = vmatprep.mubr.bf16.mxu0 0
        %1544 = vmatmul.mubr.bf16.gmra.mxu0 %v1509
        %v1545 = vpop.f32.mrf.mxu0
        %v1546 = vadd.f32 %v1495, %v1545
        %v1547 = vpop.f32.mrf.mxu0
        %v1548 = vpop.f32.mrf.mxu0
        %v1549 = vadd.f32 %v1495, %v1548
        %v1550 = vpop.f32.mrf.mxu0
        %1551 = vdwg.mxu0
        %v1552 = vadd.f32 %v455, %v1546
        %v1553 = vadd.f32 %v456, %v1549
        %v1554 = vsel %vm469, %v1552, 0.0
        %1555 = vadd.xlane.f32.xlu0 %v1554
        %v1556 = vpop.xlane.xlu0 %1555
        %v1557 = vsel %vm469, %v1553, 0.0
        %1558 = vadd.xlane.f32.xlu0 %v1557
        %v1559 = vpop.xlane.xlu0 %1558
        %v1560 = vrcp.pop 32.0
        %v1561 = vmul.f32 %v1556, %v1560
        %v1562 = vmul.f32 %v1559, %v1560
        %v1563 = vsub.f32 %v1552, %v1561
        %v1564 = vsub.f32 %v1553, %v1562
        %v1565 = vmul.f32 %v1563, %v1563
        %v1566 = vmul.f32 %v1564, %v1564
        %v1567 = vsel %vm469, %v1565, 0.0
        %1568 = vadd.xlane.f32.xlu0 %v1567
        %v1569 = vpop.xlane.xlu0 %1568
        %v1570 = vsel %vm469, %v1566, 0.0
        %1571 = vadd.xlane.f32.xlu0 %v1570
        %v1572 = vpop.xlane.xlu0 %1571
        %v1573 = vmul.f32 %v1569, %v1560
        %v1574 = vmul.f32 %v1572, %v1560
        %v1575 = vadd.f32 %v1573, 1e-05
        %v1576 = vadd.f32 %v1574, 1e-05
        %v1577 = vrsqrt.pop %v1575
        %v1578 = vrsqrt.pop %v1576
        %v1579 = vmul.f32 %v1563, %v1577
        %v1580 = vmul.f32 %v1564, %v1578
        %v1581 = vlaneseq
        %v1582 = vshrl.u32 %v1581, 7
        %v1583 = vsub.s32 4, %v1582
        %v1584 = vrot.slane %v458, %v1583
        %v1585 = vmul.f32 %v1579, %v1584
        %v1586 = vmul.f32 %v1580, %v1584
        %v1587 = vlaneseq
        %v1588 = vshrl.u32 %v1587, 7
        %v1589 = vsub.s32 5, %v1588
        %v1590 = vrot.slane %v458, %v1589
        %v1591 = vadd.f32 %v1585, %v1590
        %v1592 = vadd.f32 %v1586, %v1590
        %v1593 = vpack.c.bf16 %v1592, %v1591
        %v1594 = vld [vmem:[%s430] sm:$0xf]
        %v1595 = vld [vmem:[%s430 + $0x4] sm:$0xf]
        %v1596 = vld [vmem:[%s430 + $0x8] sm:$0xf]
        %v1597 = vld [vmem:[%s430 + $0xc] sm:$0xf]
        %v1598 = vld [vmem:[%s443] sm:$0x1]
        %v1600 = vlaneseq
        %v1601 = vshrl.u32 %v1600, 7
        %v1602 = vsub.s32 0, %v1601
        %v1603 = vrot.slane %v1598, %v1602
        %v1609 = vunpack.c.l.b16 %v1594
        %v1610 = vunpack.c.l.b16 %v1595
        %v1611 = vunpack.c.l.b16 %v1596
        %v1612 = vunpack.c.l.b16 %v1597
        %v1613 = vpack.c.b16 %v1610, %v1609
        %v1614 = vpack.c.b16 %v1612, %v1611
        %v1618 = vsel %vm469, %v1593, 0
        %1620 = vmatprep.subr.bf16.mxu0 0
        %1621 = vmatpush1.bf16.msra.mxu0 0
        %1622 = vmatprep.subr.bf16.mxu0 0
        %1623 = vmatpush1.bf16.msra.mxu0 0
        %1624 = vmatprep.subr.bf16.mxu0 0
        %1625 = vmatpush1.bf16.msra.mxu0 0
        %1626 = vmatprep.subr.bf16.mxu0 0
        %1627 = vmatpush1.bf16.msra.mxu0 0
        %1628 = vmatprep.subr.bf16.mxu0 0
        %1629 = vmatpush1.bf16.msra.mxu0 0
        %1630 = vmatprep.subr.bf16.mxu0 0
        %1631 = vmatpush1.bf16.msra.mxu0 0
        %1632 = vmatprep.subr.bf16.mxu0 0
        %1633 = vmatpush1.bf16.msra.mxu0 %v1614
        %1634 = vmatprep.subr.bf16.mxu0 0
        %1635 = vmatpush1.bf16.msra.mxu0 %v1613
        %1636 = vmatprep.subr.bf16.mxu0 0
        %1637 = vmatpush2.bf16.msra.mxu0 0
        %1638 = vmatprep.subr.bf16.mxu0 0
        %1639 = vmatpush2.bf16.msra.mxu0 0
        %1640 = vmatprep.subr.bf16.mxu0 0
        %1641 = vmatpush2.bf16.msra.mxu0 0
        %1642 = vmatprep.subr.bf16.mxu0 0
        %1643 = vmatpush2.bf16.msra.mxu0 0
        %1644 = vmatprep.subr.bf16.mxu0 0
        %1645 = vmatpush2.bf16.msra.mxu0 0
        %1646 = vmatprep.subr.bf16.mxu0 0
        %1647 = vmatpush2.bf16.msra.mxu0 0
        %1648 = vmatprep.subr.bf16.mxu0 0
        %1649 = vmatpush2.bf16.msra.mxu0 0
        %1650 = vmatprep.subr.bf16.mxu0 0
        %1651 = vmatpush2.bf16.msra.mxu0 0
        %1652 = vmatprep.mubr.bf16.mxu0 0
        %1653 = vmatmul.mubr.bf16.gmra.mxu0 %v1618
        %v1654 = vpop.f32.mrf.mxu0
        %v1655 = vadd.f32 %v1603, %v1654
        %v1656 = vpop.f32.mrf.mxu0
        %v1657 = vpop.f32.mrf.mxu0
        %v1658 = vadd.f32 %v1603, %v1657
        %v1659 = vpop.f32.mrf.mxu0
        %1660 = vdwg.mxu0
        %v1661 = vmul.f32 %v1655, 0.5
        %v1662 = vmul.f32 %v1658, 0.5
        %v1663 = vmul.f32 %v1655, 0.044715
        %v1664 = vmul.f32 %v1658, 0.044715
        %v1665 = vmul.f32 %v1663, %v1655
        %v1666 = vmul.f32 %v1664, %v1658
        %v1667 = vmul.f32 %v1665, %v1655
        %v1668 = vmul.f32 %v1666, %v1658
        %v1669 = vadd.f32 %v1655, %v1667
        %v1670 = vadd.f32 %v1658, %v1668
        %v1671 = vmul.f32 %v1669, 0.7978846
        %v1672 = vmul.f32 %v1670, 0.7978846
        %v1673 = vtanh.pop %v1671
        %v1674 = vtanh.pop %v1672
        %v1675 = vadd.f32 %v1673, 1.0
        %v1676 = vadd.f32 %v1674, 1.0
        %v1677 = vmul.f32 %v1661, %v1675
        %v1678 = vmul.f32 %v1662, %v1676
        %v1679 = vpack.c.bf16 %v1678, %v1677
        %v1680 = vld [vmem:[%s435] sm:$0xf]
        %v1681 = vld [vmem:[%s435 + $0x4] sm:$0xf]
        %v1682 = vld [vmem:[%s435 + $0x8] sm:$0xf]
        %v1683 = vld [vmem:[%s435 + $0xc] sm:$0xf]
        %v1684 = vld [vmem:[%s435 + $0x10] sm:$0xf]
        %v1685 = vld [vmem:[%s435 + $0x14] sm:$0xf]
        %v1686 = vld [vmem:[%s435 + $0x18] sm:$0xf]
        %v1687 = vld [vmem:[%s435 + $0x1c] sm:$0xf]
        %v1688 = vld [vmem:[%s435 + $0x20] sm:$0xf]
        %v1689 = vld [vmem:[%s435 + $0x24] sm:$0xf]
        %v1690 = vld [vmem:[%s435 + $0x28] sm:$0xf]
        %v1691 = vld [vmem:[%s435 + $0x2c] sm:$0xf]
        %v1692 = vld [vmem:[%s435 + $0x30] sm:$0xf]
        %v1693 = vld [vmem:[%s435 + $0x34] sm:$0xf]
        %v1694 = vld [vmem:[%s435 + $0x38] sm:$0xf]
        %v1695 = vld [vmem:[%s435 + $0x3c] sm:$0xf]
        %v1696 = vlaneseq
        %v1697 = vshrl.u32 %v1696, 7
        %v1698 = vsub.s32 6, %v1697
        %v1699 = vrot.slane %v458, %v1698
        %v1716 = vunpack.c.l.b16 %v1680
        %v1717 = vunpack.c.l.b16 %v1681
        %v1718 = vunpack.c.l.b16 %v1682
        %v1719 = vunpack.c.l.b16 %v1683
        %v1720 = vunpack.c.l.b16 %v1684
        %v1721 = vunpack.c.l.b16 %v1685
        %v1722 = vunpack.c.l.b16 %v1686
        %v1723 = vunpack.c.l.b16 %v1687
        %v1724 = vunpack.c.l.b16 %v1688
        %v1725 = vunpack.c.l.b16 %v1689
        %v1726 = vunpack.c.l.b16 %v1690
        %v1727 = vunpack.c.l.b16 %v1691
        %v1728 = vunpack.c.l.b16 %v1692
        %v1729 = vunpack.c.l.b16 %v1693
        %v1730 = vunpack.c.l.b16 %v1694
        %v1731 = vunpack.c.l.b16 %v1695
        %v1732 = vpack.c.b16 %v1717, %v1716
        %v1733 = vpack.c.b16 %v1719, %v1718
        %v1734 = vpack.c.b16 %v1721, %v1720
        %v1735 = vpack.c.b16 %v1723, %v1722
        %v1736 = vpack.c.b16 %v1725, %v1724
        %v1737 = vpack.c.b16 %v1727, %v1726
        %v1738 = vpack.c.b16 %v1729, %v1728
        %v1739 = vpack.c.b16 %v1731, %v1730
        %1748 = vmatprep.subr.bf16.mxu0 0
        %1749 = vmatpush1.bf16.msra.mxu0 %v1739
        %1750 = vmatprep.subr.bf16.mxu0 0
        %1751 = vmatpush1.bf16.msra.mxu0 %v1738
        %1752 = vmatprep.subr.bf16.mxu0 0
        %1753 = vmatpush1.bf16.msra.mxu0 %v1737
        %1754 = vmatprep.subr.bf16.mxu0 0
        %1755 = vmatpush1.bf16.msra.mxu0 %v1736
        %1756 = vmatprep.subr.bf16.mxu0 0
        %1757 = vmatpush1.bf16.msra.mxu0 %v1735
        %1758 = vmatprep.subr.bf16.mxu0 0
        %1759 = vmatpush1.bf16.msra.mxu0 %v1734
        %1760 = vmatprep.subr.bf16.mxu0 0
        %1761 = vmatpush1.bf16.msra.mxu0 %v1733
        %1762 = vmatprep.subr.bf16.mxu0 0
        %1763 = vmatpush1.bf16.msra.mxu0 %v1732
        %1764 = vmatprep.subr.bf16.mxu0 0
        %1765 = vmatpush2.bf16.msra.mxu0 0
        %1766 = vmatprep.subr.bf16.mxu0 0
        %1767 = vmatpush2.bf16.msra.mxu0 0
        %1768 = vmatprep.subr.bf16.mxu0 0
        %1769 = vmatpush2.bf16.msra.mxu0 0
        %1770 = vmatprep.subr.bf16.mxu0 0
        %1771 = vmatpush2.bf16.msra.mxu0 0
        %1772 = vmatprep.subr.bf16.mxu0 0
        %1773 = vmatpush2.bf16.msra.mxu0 0
        %1774 = vmatprep.subr.bf16.mxu0 0
        %1775 = vmatpush2.bf16.msra.mxu0 0
        %1776 = vmatprep.subr.bf16.mxu0 0
        %1777 = vmatpush2.bf16.msra.mxu0 0
        %1778 = vmatprep.subr.bf16.mxu0 0
        %1779 = vmatpush2.bf16.msra.mxu0 0
        %1780 = vmatprep.mubr.bf16.mxu0 0
        %1781 = vmatmul.mubr.bf16.gmra.mxu0 %v1679
        %v1782 = vpop.f32.mrf.mxu0
        %v1783 = vadd.f32 %v1699, %v1782
        %v1784 = vpop.f32.mrf.mxu0
        %v1785 = vpop.f32.mrf.mxu0
        %v1786 = vadd.f32 %v1699, %v1785
        %v1787 = vpop.f32.mrf.mxu0
        %1788 = vdwg.mxu0
        %v1789 = vadd.f32 %v1591, %v1783
        %v1790 = vadd.f32 %v1592, %v1786
        %v1791 = vsel %vm469, %v1789, 0.0
        %1792 = vadd.xlane.f32.xlu0 %v1791
        %v1793 = vpop.xlane.xlu0 %1792
        %v1794 = vsel %vm469, %v1790, 0.0
        %1795 = vadd.xlane.f32.xlu0 %v1794
        %v1796 = vpop.xlane.xlu0 %1795
        %v1797 = vmul.f32 %v1793, %v1560
        %v1798 = vmul.f32 %v1796, %v1560
        %v1799 = vsub.f32 %v1789, %v1797
        %v1800 = vsub.f32 %v1790, %v1798
        %v1801 = vmul.f32 %v1799, %v1799
        %v1802 = vmul.f32 %v1800, %v1800
        %v1803 = vsel %vm469, %v1801, 0.0
        %1804 = vadd.xlane.f32.xlu0 %v1803
        %v1805 = vpop.xlane.xlu0 %1804
        %v1806 = vsel %vm469, %v1802, 0.0
        %1807 = vadd.xlane.f32.xlu0 %v1806
        %v1808 = vpop.xlane.xlu0 %1807
        %v1809 = vmul.f32 %v1805, %v1560
        %v1810 = vmul.f32 %v1808, %v1560
        %v1811 = vadd.f32 %v1809, 1e-05
        %v1812 = vadd.f32 %v1810, 1e-05
        %v1813 = vrsqrt.pop %v1811
        %v1814 = vrsqrt.pop %v1812
        %v1815 = vmul.f32 %v1799, %v1813
        %v1816 = vmul.f32 %v1800, %v1814
        %v1817 = vlaneseq
        %v1818 = vshrl.u32 %v1817, 7
        %v1819 = vsub.s32 7, %v1818
        %v1820 = vrot.slane %v458, %v1819
        %v1821 = vmul.f32 %v1815, %v1820
        %v1822 = vmul.f32 %v1816, %v1820
        %v1823 = vlaneseq
        %v1824 = vshrl.u32 %v1823, 7
        %v1825 = vsub.s32 0, %v1824
        %v1826 = vrot.slane %v459, %v1825
        %v1827 = vadd.f32 %v1821, %v1826
        %v1828 = vadd.f32 %v1822, %v1826
        %1829 = vst.msk [vmem:[#allocation2] sm:$0xff] %vm469, %v1827
        %1830 = vst.msk [vmem:[#allocation2 + $0x8] sm:$0xff] %vm469, %v1828
        // Predicated region
        $region57: #{tpu_custom_call.1} parent=51 // pred_check
          %p1831 = pneg %p258
        $region58: #{tpu_custom_call.1} parent=51 // pred_check_branch
          %1833 = sbr.rel (%p1831) target = $region60
        $region59: #{tpu_custom_call.1} parent=51 // pred_region
          %s1834 = smul.u32 2, %s24
          %s1836 = ssub.s32 256, 256
          %1837 = vsyncadd [#allocation3], %s1836
          %s1838 = smul.addr %s1834, 128
          %s1839 = scalar_lea.hbm %s8, %s1838
          %s1840 = sshll.u32 [#allocation2], 4
          %s1841 = int_to_ptr.vmem [resolvable:$true] %s1840
          %1846 = dma.vmem_to_hbm [thread:$0]  %s1841, 256, %s1839, [#allocation3], 128, 128, 8
        $region60: #{tpu_custom_call.1} parent=51 // pred_fallthru
          _
        // Predicated region
        $region61: #{tpu_custom_call.1} parent=51 // pred_check
          %p1847 = pneg %p258
        $region62: #{tpu_custom_call.1} parent=51 // pred_check_branch
          %1849 = sbr.rel (%p1847) target = $region64
        $region63: #{tpu_custom_call.1} parent=51 // pred_region
          %1850 = dma.done [#allocation3], 256
        $region64: #{tpu_custom_call.1} parent=51 // pred_fallthru
          _
      $region52: #{tpu_custom_call.1} parent=5 // pred_fallthru
        _
      %p1851 = scmp.le.s32.totalorder 2, %s15
      // Predicated region
      $region65: #{tpu_custom_call.1} parent=5 // pred_check
        %p1852 = pneg %p1851
      $region66: #{tpu_custom_call.1} parent=5 // pred_check_branch
        %1854 = sbr.rel (%p1852) target = $region68
      $region67: #{tpu_custom_call.1} parent=5 // pred_region
        %s1855 = ssub.s32 %s15, 2
      $region68: #{tpu_custom_call.1} parent=5 // pred_fallthru
        _
    $region6: #{tpu_custom_call.1} parent=1 // loop_footer
      %s19 = sadd.s32 1, %s15
    $region7: #{tpu_custom_call.1} parent=1 // loop_footer_branch
      %14 = sbr.rel target = $region3
    $region8: #{tpu_custom_call.1} parent=1 // loop_exit
      _
    %1856 = vsyncpa [#allocation3], 1
    %s1857 = scalar_lea.sflag [#allocation3], 1
    %1858 = vsyncpa %s1857, 1

</llo_original>
